<compile_context>
chip_gen: v7x
topology: tpu7x:2x2x1
jax: 0.10.0
libtpu: 0.0.40
codegen_flags: <defaults>
</compile_context>

<pallas_src>
import functools

import jax
import jax.numpy as jnp
from jax import lax
from jax.experimental import pallas as pl
from jax.experimental.pallas import tpu as pltpu


def _freblock_kernel(mag_ref, pha_ref, yph_ref, mul_ref, add_ref,
                     wm1_ref, bm1_ref, wm2_ref, bm2_ref,
                     wp1_ref, bp1_ref, wp2_ref, bp2_ref,
                     wfx_ref, wfm_ref, bf_ref,
                     wcy_ref, wcp_ref, bc_ref,
                     real_ref, imag_ref):
    f32 = jnp.float32
    dot = lambda a, b: jnp.dot(a, b, preferred_element_type=f32)

    # processmag: Conv1x1 -> LeakyReLU(0.1) -> Conv1x1 (block-diagonal weights)
    m = dot(mag_ref[...], wm1_ref[...]) + bm1_ref[...]
    m = jnp.where(m >= 0, m, 0.1 * m)
    m = dot(m, wm2_ref[...]) + bm2_ref[...]

    # processpha: Conv1x1 -> LeakyReLU(0.1) -> Conv1x1
    p = dot(pha_ref[...], wp1_ref[...]) + bp1_ref[...]
    p = jnp.where(p >= 0, p, 0.1 * p)
    p = dot(p, wp2_ref[...]) + bp2_ref[...]

    # SFT: mul/add are precomputed 3x3 conv outputs of y_amp.
    # convfuse(cat([m, mul*m+add])) == m @ Wfx + (mul*m+add) @ Wfm + bf
    sft2 = mul_ref[...] * m + add_ref[...]
    mag_out = dot(m, wfx_ref[...]) + dot(sft2, wfm_ref[...]) + bf_ref[...]

    # self.cat(cat([y_phase, pha])) == yph @ Wcy + p @ Wcp + bc
    pha_out = dot(yph_ref[...], wcy_ref[...]) + dot(p, wcp_ref[...]) + bc_ref[...]

    real_ref[...] = mag_out * jnp.cos(pha_out)
    imag_ref[...] = mag_out * jnp.sin(pha_out)


def freblock_adjust(x, y_amp, y_phase, params, *, tr_target=1024):
    """x: complex64 NCHW, y_amp/y_phase: float32 NCHW. Returns complex64 NCHW."""
    N, C, H, W = x.shape
    assert 128 % C == 0, "channel count must divide 128 (pad channels otherwise)"
    G = 128 // C                      # pixels packed per 128-wide lane row
    M = N * H * W

    nhwc = lambda a: jnp.transpose(a, (0, 2, 3, 1))
    flat = lambda a: nhwc(a).reshape(M, C)

    # torch.abs / torch.angle computed in the same wrapper pass that already
    # reshapes NCHW -> pixel-major; the kernel only reads mag/pha (2C floats,
    # same bytes as xr/xi, no atan2 lowering risk in-kernel).
    # TODO(synk): move angle() inside the kernel once atan2 lowering is guaranteed.
    mag = flat(jnp.abs(x))
    pha = flat(jnp.angle(x))
    yph = flat(y_phase)

    # SFT convmul/convadd: plain 3x3 convs done by XLA in the wrapper; the 9x
    # im2col intermediate of the previous version is gone.
    # TODO(synk): alternative is an in-kernel 3x3 via row-halo tiles + pltpu.roll.
    ya = nhwc(y_amp)

    def conv3(w_hwio, b):
        return lax.conv_general_dilated(
            ya, w_hwio, (1, 1), 'SAME',
            dimension_numbers=('NHWC', 'HWIO', 'NHWC')) + b[0]

    mul = conv3(params['wmul_hwio'], params['bmul']).reshape(M, C)
    add = conv3(params['wadd_hwio'], params['badd']).reshape(M, C)

    # --- lane-dense packing: G pixels x C channels per 128-wide row ----------
    round_up = lambda v, m_: pl.cdiv(v, m_) * m_
    L_raw = pl.cdiv(M, G)                             # rows needed
    TR = min(tr_target, max(8, round_up(pl.cdiv(L_raw, 2), 8)))   # row tile
    Lp = round_up(L_raw, 2 * TR)                      # even grid (v7x: 2 TCs)
    Mp = Lp * G
    grid = (Lp // TR,)

    def pack(a):                                      # (M, C) -> (Lp, 128)
        return jnp.pad(a, ((0, Mp - M), (0, 0))).reshape(Lp, G * C)

    pix = [pack(a) for a in (mag, pha, yph, mul, add)]

    # --- parameters: block-diagonal kron(I_G, W) weights, lane-tiled biases ---
    eye = jnp.eye(G, dtype=jnp.float32)
    bd = lambda w: jnp.kron(eye, w)                   # (128, 128)
    tb = lambda b: jnp.tile(b[0], G).reshape(1, G * C)  # (1, 128)
    wfuse, wcat = params['wfuse'], params['wcat']
    param_vals = [
        bd(params['wm1']), tb(params['bm1']), bd(params['wm2']), tb(params['bm2']),
        bd(params['wp1']), tb(params['bp1']), bd(params['wp2']), tb(params['bp2']),
        bd(wfuse[:C]), bd(wfuse[C:]), tb(params['bf']),
        bd(wcat[:C]), bd(wcat[C:]), tb(params['bc']),
    ]

    row_spec = pl.BlockSpec((TR, G * C), lambda i: (i, 0))
    param_specs = [pl.BlockSpec(v.shape, lambda i: (0, 0)) for v in param_vals]

    real2d, imag2d = pl.pallas_call(
        _freblock_kernel,
        out_shape=(jax.ShapeDtypeStruct((Lp, G * C), jnp.float32),
                   jax.ShapeDtypeStruct((Lp, G * C), jnp.float32)),
        grid=grid,
        in_specs=[row_spec] * 5 + param_specs,
        out_specs=(row_spec, row_spec),
        compiler_params=pltpu.CompilerParams(
            dimension_semantics=("parallel",),
            vmem_limit_bytes=32 * 1024 * 1024),
    )(*pix, *param_vals)

    def unpack(z):                                    # (Lp, 128) -> (N, C, H, W)
        a = z.reshape(Mp, C)[:M].reshape(N, H, W, C)
        return jnp.transpose(a, (0, 3, 1, 2))

    return lax.complex(unpack(real2d), unpack(imag2d))


def init_params(key, nc):
    """Deterministic synthetic weights (matmul / HWIO layouts, not NCHW)."""
    ks = jax.random.split(key, 16)
    w = lambda k, shape: 0.2 * jax.random.normal(k, shape, jnp.float32)
    return dict(
        wm1=w(ks[0], (nc, nc)), bm1=w(ks[1], (1, nc)),
        wm2=w(ks[2], (nc, nc)), bm2=w(ks[3], (1, nc)),
        wp1=w(ks[4], (nc, nc)), bp1=w(ks[5], (1, nc)),
        wp2=w(ks[6], (nc, nc)), bp2=w(ks[7], (1, nc)),
        wmul_hwio=w(ks[8], (3, 3, nc, nc)), bmul=w(ks[9], (1, nc)),
        wadd_hwio=w(ks[10], (3, 3, nc, nc)), badd=w(ks[11], (1, nc)),
        wfuse=w(ks[12], (2 * nc, nc)), bf=w(ks[13], (1, nc)),
        wcat=w(ks[14], (2 * nc, nc)), bc=w(ks[15], (1, nc)),
    )


def ref_forward(x, y_amp, y_phase, p):
    """Pure-JAX reference (real convs via lax.conv) for a sanity check."""
    nhwc = lambda a: jnp.transpose(a, (0, 2, 3, 1))
    nchw = lambda a: jnp.transpose(a, (0, 3, 1, 2))
    lrelu = lambda v: jnp.where(v >= 0, v, 0.1 * v)

    def conv1x1(a, w, b):
        return jnp.einsum('nhwc,cd->nhwd', a, w) + b[0]

    def conv3x3(a, w_hwio, b):
        return lax.conv_general_dilated(
            a, w_hwio, (1, 1), 'SAME',
            dimension_numbers=('NHWC', 'HWIO', 'NHWC')) + b[0]

    mag = nhwc(jnp.abs(x))
    pha = nhwc(jnp.angle(x))
    ya = nhwc(y_amp)
    yp = nhwc(y_phase)

    m = conv1x1(lrelu(conv1x1(mag, p['wm1'], p['bm1'])), p['wm2'], p['bm2'])
    ph = conv1x1(lrelu(conv1x1(pha, p['wp1'], p['bp1'])), p['wp2'], p['bp2'])

    mul = conv3x3(ya, p['wmul_hwio'], p['bmul'])
    add = conv3x3(ya, p['wadd_hwio'], p['badd'])
    fuse_in = jnp.concatenate([m, mul * m + add], axis=-1)
    mag_out = jnp.einsum('nhwc,cd->nhwd', fuse_in, p['wfuse']) + p['bf'][0]

    cat_in = jnp.concatenate([yp, ph], axis=-1)
    pha_out = jnp.einsum('nhwc,cd->nhwd', cat_in, p['wcat']) + p['bc'][0]

    return nchw(lax.complex(mag_out * jnp.cos(pha_out),
                            mag_out * jnp.sin(pha_out)))


if __name__ == "__main__":
    key = jax.random.PRNGKey(0)
    N, C, H, W = 2, 4, 16, 16
    kxr, kxi, ka, kp, kw = jax.random.split(key, 5)

    x = lax.complex(jax.random.normal(kxr, (N, C, H, W), jnp.float32),
                    jax.random.normal(kxi, (N, C, H, W), jnp.float32))
    y_amp = jax.random.normal(ka, (N, C, H, W), jnp.float32)
    y_phase = jax.random.normal(kp, (N, C, H, W), jnp.float32)
    params = init_params(kw, C)

    fn = jax.jit(functools.partial(freblock_adjust, params=params))
    out = jax.block_until_ready(fn(x, y_amp, y_phase))

    assert out.shape == (N, C, H, W) and out.dtype == jnp.complex64

    ref = ref_forward(x, y_amp, y_phase, params)
    max_err = float(jnp.max(jnp.abs(out - ref)))
    assert max_err < 5e-2, f"mismatch vs reference: max abs err = {max_err}"

    print("KERNEL_OK")
</pallas_src>

<mosaic_0001>
module attributes {stable_mosaic.version = 11 : i64} {
  func.func @_freblock_kernel(%arg0: i32, %arg1: memref<8x128xf32, #tpu.memory_space<vmem>>, %arg2: memref<8x128xf32, #tpu.memory_space<vmem>>, %arg3: memref<8x128xf32, #tpu.memory_space<vmem>>, %arg4: memref<8x128xf32, #tpu.memory_space<vmem>>, %arg5: memref<8x128xf32, #tpu.memory_space<vmem>>, %arg6: memref<128x128xf32, #tpu.memory_space<vmem>>, %arg7: memref<1x128xf32, #tpu.memory_space<vmem>>, %arg8: memref<128x128xf32, #tpu.memory_space<vmem>>, %arg9: memref<1x128xf32, #tpu.memory_space<vmem>>, %arg10: memref<128x128xf32, #tpu.memory_space<vmem>>, %arg11: memref<1x128xf32, #tpu.memory_space<vmem>>, %arg12: memref<128x128xf32, #tpu.memory_space<vmem>>, %arg13: memref<1x128xf32, #tpu.memory_space<vmem>>, %arg14: memref<128x128xf32, #tpu.memory_space<vmem>>, %arg15: memref<128x128xf32, #tpu.memory_space<vmem>>, %arg16: memref<1x128xf32, #tpu.memory_space<vmem>>, %arg17: memref<128x128xf32, #tpu.memory_space<vmem>>, %arg18: memref<128x128xf32, #tpu.memory_space<vmem>>, %arg19: memref<1x128xf32, #tpu.memory_space<vmem>>, %arg20: memref<8x128xf32, #tpu.memory_space<vmem>>, %arg21: memref<8x128xf32, #tpu.memory_space<vmem>>) attributes {dimension_semantics = [#tpu.dimension_semantics<parallel>], iteration_bounds = array<i64: 2>, scalar_prefetch = 0 : i64, scratch_operands = 0 : i64, tpu.core_type = #tpu.core_type<tc>, window_params = [{transform_indices = @transform_0, window_bounds = array<i64: 8, 128>}, {transform_indices = @transform_1, window_bounds = array<i64: 8, 128>}, {transform_indices = @transform_2, window_bounds = array<i64: 8, 128>}, {transform_indices = @transform_3, window_bounds = array<i64: 8, 128>}, {transform_indices = @transform_4, window_bounds = array<i64: 8, 128>}, {pipeline_mode = #tpu.pipeline_mode<synchronous>, transform_indices = @transform_5, window_bounds = array<i64: 128, 128>}, {pipeline_mode = #tpu.pipeline_mode<synchronous>, transform_indices = @transform_6, window_bounds = array<i64: 1, 128>}, {pipeline_mode = #tpu.pipeline_mode<synchronous>, transform_indices = @transform_7, window_bounds = array<i64: 128, 128>}, {pipeline_mode = #tpu.pipeline_mode<synchronous>, transform_indices = @transform_8, window_bounds = array<i64: 1, 128>}, {pipeline_mode = #tpu.pipeline_mode<synchronous>, transform_indices = @transform_9, window_bounds = array<i64: 128, 128>}, {pipeline_mode = #tpu.pipeline_mode<synchronous>, transform_indices = @transform_10, window_bounds = array<i64: 1, 128>}, {pipeline_mode = #tpu.pipeline_mode<synchronous>, transform_indices = @transform_11, window_bounds = array<i64: 128, 128>}, {pipeline_mode = #tpu.pipeline_mode<synchronous>, transform_indices = @transform_12, window_bounds = array<i64: 1, 128>}, {pipeline_mode = #tpu.pipeline_mode<synchronous>, transform_indices = @transform_13, window_bounds = array<i64: 128, 128>}, {pipeline_mode = #tpu.pipeline_mode<synchronous>, transform_indices = @transform_14, window_bounds = array<i64: 128, 128>}, {pipeline_mode = #tpu.pipeline_mode<synchronous>, transform_indices = @transform_15, window_bounds = array<i64: 1, 128>}, {pipeline_mode = #tpu.pipeline_mode<synchronous>, transform_indices = @transform_16, window_bounds = array<i64: 128, 128>}, {pipeline_mode = #tpu.pipeline_mode<synchronous>, transform_indices = @transform_17, window_bounds = array<i64: 128, 128>}, {pipeline_mode = #tpu.pipeline_mode<synchronous>, transform_indices = @transform_18, window_bounds = array<i64: 1, 128>}, {transform_indices = @transform_19, window_bounds = array<i64: 8, 128>}, {transform_indices = @transform_20, window_bounds = array<i64: 8, 128>}]} {
    %c0 = arith.constant 0 : index
    %c0_0 = arith.constant 0 : index
    %0 = vector.load %arg1[%c0, %c0_0] : memref<8x128xf32, #tpu.memory_space<vmem>>, vector<8x128xf32>
    %c0_1 = arith.constant 0 : index
    %c0_2 = arith.constant 0 : index
    %1 = vector.load %arg6[%c0_1, %c0_2] : memref<128x128xf32, #tpu.memory_space<vmem>>, vector<128x128xf32>
    %cst = arith.constant dense<0.000000e+00> : vector<8x128xf32>
    %2 = tpu.matmul %0, %1, %cst {dimension_numbers = #tpu.dot_dimension_numbers<[1], [0], [0], [1], [0, 0, 1, 1], [], []>} : vector<8x128xf32>, vector<128x128xf32>, vector<8x128xf32> -> vector<8x128xf32>
    %c0_3 = arith.constant 0 : index
    %c0_4 = arith.constant 0 : index
    %3 = vector.load %arg7[%c0_3, %c0_4] : memref<1x128xf32, #tpu.memory_space<vmem>>, vector<1x128xf32>
    %4 = vector.broadcast %3 : vector<1x128xf32> to vector<8x128xf32>
    %5 = arith.addf %2, %4 : vector<8x128xf32>
    %cst_5 = arith.constant 0.000000e+00 : f32
    %6 = vector.broadcast %cst_5 : f32 to vector<8x128xf32>
    %7 = arith.cmpf oge, %5, %6 : vector<8x128xf32>
    %cst_6 = arith.constant 1.000000e-01 : f32
    %8 = vector.broadcast %cst_6 : f32 to vector<8x128xf32>
    %9 = arith.mulf %8, %5 : vector<8x128xf32>
    %10 = arith.select %7, %5, %9 : vector<8x128xi1>, vector<8x128xf32>
    %c0_7 = arith.constant 0 : index
    %c0_8 = arith.constant 0 : index
    %11 = vector.load %arg8[%c0_7, %c0_8] : memref<128x128xf32, #tpu.memory_space<vmem>>, vector<128x128xf32>
    %cst_9 = arith.constant dense<0.000000e+00> : vector<8x128xf32>
    %12 = tpu.matmul %10, %11, %cst_9 {dimension_numbers = #tpu.dot_dimension_numbers<[1], [0], [0], [1], [0, 0, 1, 1], [], []>} : vector<8x128xf32>, vector<128x128xf32>, vector<8x128xf32> -> vector<8x128xf32>
    %c0_10 = arith.constant 0 : index
    %c0_11 = arith.constant 0 : index
    %13 = vector.load %arg9[%c0_10, %c0_11] : memref<1x128xf32, #tpu.memory_space<vmem>>, vector<1x128xf32>
    %14 = vector.broadcast %13 : vector<1x128xf32> to vector<8x128xf32>
    %15 = arith.addf %12, %14 : vector<8x128xf32>
    %c0_12 = arith.constant 0 : index
    %c0_13 = arith.constant 0 : index
    %16 = vector.load %arg2[%c0_12, %c0_13] : memref<8x128xf32, #tpu.memory_space<vmem>>, vector<8x128xf32>
    %c0_14 = arith.constant 0 : index
    %c0_15 = arith.constant 0 : index
    %17 = vector.load %arg10[%c0_14, %c0_15] : memref<128x128xf32, #tpu.memory_space<vmem>>, vector<128x128xf32>
    %cst_16 = arith.constant dense<0.000000e+00> : vector<8x128xf32>
    %18 = tpu.matmul %16, %17, %cst_16 {dimension_numbers = #tpu.dot_dimension_numbers<[1], [0], [0], [1], [0, 0, 1, 1], [], []>} : vector<8x128xf32>, vector<128x128xf32>, vector<8x128xf32> -> vector<8x128xf32>
    %c0_17 = arith.constant 0 : index
    %c0_18 = arith.constant 0 : index
    %19 = vector.load %arg11[%c0_17, %c0_18] : memref<1x128xf32, #tpu.memory_space<vmem>>, vector<1x128xf32>
    %20 = vector.broadcast %19 : vector<1x128xf32> to vector<8x128xf32>
    %21 = arith.addf %18, %20 : vector<8x128xf32>
    %cst_19 = arith.constant 0.000000e+00 : f32
    %22 = vector.broadcast %cst_19 : f32 to vector<8x128xf32>
    %23 = arith.cmpf oge, %21, %22 : vector<8x128xf32>
    %cst_20 = arith.constant 1.000000e-01 : f32
    %24 = vector.broadcast %cst_20 : f32 to vector<8x128xf32>
    %25 = arith.mulf %24, %21 : vector<8x128xf32>
    %26 = arith.select %23, %21, %25 : vector<8x128xi1>, vector<8x128xf32>
    %c0_21 = arith.constant 0 : index
    %c0_22 = arith.constant 0 : index
    %27 = vector.load %arg12[%c0_21, %c0_22] : memref<128x128xf32, #tpu.memory_space<vmem>>, vector<128x128xf32>
    %cst_23 = arith.constant dense<0.000000e+00> : vector<8x128xf32>
    %28 = tpu.matmul %26, %27, %cst_23 {dimension_numbers = #tpu.dot_dimension_numbers<[1], [0], [0], [1], [0, 0, 1, 1], [], []>} : vector<8x128xf32>, vector<128x128xf32>, vector<8x128xf32> -> vector<8x128xf32>
    %c0_24 = arith.constant 0 : index
    %c0_25 = arith.constant 0 : index
    %29 = vector.load %arg13[%c0_24, %c0_25] : memref<1x128xf32, #tpu.memory_space<vmem>>, vector<1x128xf32>
    %30 = vector.broadcast %29 : vector<1x128xf32> to vector<8x128xf32>
    %31 = arith.addf %28, %30 : vector<8x128xf32>
    %c0_26 = arith.constant 0 : index
    %c0_27 = arith.constant 0 : index
    %32 = vector.load %arg4[%c0_26, %c0_27] : memref<8x128xf32, #tpu.memory_space<vmem>>, vector<8x128xf32>
    %33 = arith.mulf %32, %15 : vector<8x128xf32>
    %c0_28 = arith.constant 0 : index
    %c0_29 = arith.constant 0 : index
    %34 = vector.load %arg5[%c0_28, %c0_29] : memref<8x128xf32, #tpu.memory_space<vmem>>, vector<8x128xf32>
    %35 = arith.addf %33, %34 : vector<8x128xf32>
    %c0_30 = arith.constant 0 : index
    %c0_31 = arith.constant 0 : index
    %36 = vector.load %arg14[%c0_30, %c0_31] : memref<128x128xf32, #tpu.memory_space<vmem>>, vector<128x128xf32>
    %cst_32 = arith.constant dense<0.000000e+00> : vector<8x128xf32>
    %37 = tpu.matmul %15, %36, %cst_32 {dimension_numbers = #tpu.dot_dimension_numbers<[1], [0], [0], [1], [0, 0, 1, 1], [], []>} : vector<8x128xf32>, vector<128x128xf32>, vector<8x128xf32> -> vector<8x128xf32>
    %c0_33 = arith.constant 0 : index
    %c0_34 = arith.constant 0 : index
    %38 = vector.load %arg15[%c0_33, %c0_34] : memref<128x128xf32, #tpu.memory_space<vmem>>, vector<128x128xf32>
    %cst_35 = arith.constant dense<0.000000e+00> : vector<8x128xf32>
    %39 = tpu.matmul %35, %38, %cst_35 {dimension_numbers = #tpu.dot_dimension_numbers<[1], [0], [0], [1], [0, 0, 1, 1], [], []>} : vector<8x128xf32>, vector<128x128xf32>, vector<8x128xf32> -> vector<8x128xf32>
    %40 = arith.addf %37, %39 : vector<8x128xf32>
    %c0_36 = arith.constant 0 : index
    %c0_37 = arith.constant 0 : index
    %41 = vector.load %arg16[%c0_36, %c0_37] : memref<1x128xf32, #tpu.memory_space<vmem>>, vector<1x128xf32>
    %42 = vector.broadcast %41 : vector<1x128xf32> to vector<8x128xf32>
    %43 = arith.addf %40, %42 : vector<8x128xf32>
    %c0_38 = arith.constant 0 : index
    %c0_39 = arith.constant 0 : index
    %44 = vector.load %arg3[%c0_38, %c0_39] : memref<8x128xf32, #tpu.memory_space<vmem>>, vector<8x128xf32>
    %c0_40 = arith.constant 0 : index
    %c0_41 = arith.constant 0 : index
    %45 = vector.load %arg17[%c0_40, %c0_41] : memref<128x128xf32, #tpu.memory_space<vmem>>, vector<128x128xf32>
    %cst_42 = arith.constant dense<0.000000e+00> : vector<8x128xf32>
    %46 = tpu.matmul %44, %45, %cst_42 {dimension_numbers = #tpu.dot_dimension_numbers<[1], [0], [0], [1], [0, 0, 1, 1], [], []>} : vector<8x128xf32>, vector<128x128xf32>, vector<8x128xf32> -> vector<8x128xf32>
    %c0_43 = arith.constant 0 : index
    %c0_44 = arith.constant 0 : index
    %47 = vector.load %arg18[%c0_43, %c0_44] : memref<128x128xf32, #tpu.memory_space<vmem>>, vector<128x128xf32>
    %cst_45 = arith.constant dense<0.000000e+00> : vector<8x128xf32>
    %48 = tpu.matmul %31, %47, %cst_45 {dimension_numbers = #tpu.dot_dimension_numbers<[1], [0], [0], [1], [0, 0, 1, 1], [], []>} : vector<8x128xf32>, vector<128x128xf32>, vector<8x128xf32> -> vector<8x128xf32>
    %49 = arith.addf %46, %48 : vector<8x128xf32>
    %c0_46 = arith.constant 0 : index
    %c0_47 = arith.constant 0 : index
    %50 = vector.load %arg19[%c0_46, %c0_47] : memref<1x128xf32, #tpu.memory_space<vmem>>, vector<1x128xf32>
    %51 = vector.broadcast %50 : vector<1x128xf32> to vector<8x128xf32>
    %52 = arith.addf %49, %51 : vector<8x128xf32>
    %53 = math.cos %52 : vector<8x128xf32>
    %54 = arith.mulf %43, %53 : vector<8x128xf32>
    %c0_48 = arith.constant 0 : index
    %c0_49 = arith.constant 0 : index
    %55 = vector.load %arg20[%c0_48, %c0_49] : memref<8x128xf32, #tpu.memory_space<vmem>>, vector<8x128xf32>
    tpu.vector_store %arg20[%c0_48, %c0_49], %54 {strides = array<i32>} : memref<8x128xf32, #tpu.memory_space<vmem>>, vector<8x128xf32>,
    %56 = math.sin %52 : vector<8x128xf32>
    %57 = arith.mulf %43, %56 : vector<8x128xf32>
    %c0_50 = arith.constant 0 : index
    %c0_51 = arith.constant 0 : index
    %58 = vector.load %arg21[%c0_50, %c0_51] : memref<8x128xf32, #tpu.memory_space<vmem>>, vector<8x128xf32>
    tpu.vector_store %arg21[%c0_50, %c0_51], %57 {strides = array<i32>} : memref<8x128xf32, #tpu.memory_space<vmem>>, vector<8x128xf32>,
    return
  }
  func.func @transform_0(%arg0: i32) -> (i32, i32) {
    %c0_i32 = arith.constant 0 : i32
    %c0_i32_0 = arith.constant 0 : i32
    return %arg0, %c0_i32 : i32, i32
  }
  func.func @transform_1(%arg0: i32) -> (i32, i32) {
    %c0_i32 = arith.constant 0 : i32
    %c0_i32_0 = arith.constant 0 : i32
    return %arg0, %c0_i32 : i32, i32
  }
  func.func @transform_2(%arg0: i32) -> (i32, i32) {
    %c0_i32 = arith.constant 0 : i32
    %c0_i32_0 = arith.constant 0 : i32
    return %arg0, %c0_i32 : i32, i32
  }
  func.func @transform_3(%arg0: i32) -> (i32, i32) {
    %c0_i32 = arith.constant 0 : i32
    %c0_i32_0 = arith.constant 0 : i32
    return %arg0, %c0_i32 : i32, i32
  }
  func.func @transform_4(%arg0: i32) -> (i32, i32) {
    %c0_i32 = arith.constant 0 : i32
    %c0_i32_0 = arith.constant 0 : i32
    return %arg0, %c0_i32 : i32, i32
  }
  func.func @transform_5(%arg0: i32) -> (i32, i32) {
    %c0_i32 = arith.constant 0 : i32
    %c0_i32_0 = arith.constant 0 : i32
    %c0_i32_1 = arith.constant 0 : i32
    return %c0_i32, %c0_i32_0 : i32, i32
  }
  func.func @transform_6(%arg0: i32) -> (i32, i32) {
    %c0_i32 = arith.constant 0 : i32
    %c0_i32_0 = arith.constant 0 : i32
    %c0_i32_1 = arith.constant 0 : i32
    return %c0_i32, %c0_i32_0 : i32, i32
  }
  func.func @transform_7(%arg0: i32) -> (i32, i32) {
    %c0_i32 = arith.constant 0 : i32
    %c0_i32_0 = arith.constant 0 : i32
    %c0_i32_1 = arith.constant 0 : i32
    return %c0_i32, %c0_i32_0 : i32, i32
  }
  func.func @transform_8(%arg0: i32) -> (i32, i32) {
    %c0_i32 = arith.constant 0 : i32
    %c0_i32_0 = arith.constant 0 : i32
    %c0_i32_1 = arith.constant 0 : i32
    return %c0_i32, %c0_i32_0 : i32, i32
  }
  func.func @transform_9(%arg0: i32) -> (i32, i32) {
    %c0_i32 = arith.constant 0 : i32
    %c0_i32_0 = arith.constant 0 : i32
    %c0_i32_1 = arith.constant 0 : i32
    return %c0_i32, %c0_i32_0 : i32, i32
  }
  func.func @transform_10(%arg0: i32) -> (i32, i32) {
    %c0_i32 = arith.constant 0 : i32
    %c0_i32_0 = arith.constant 0 : i32
    %c0_i32_1 = arith.constant 0 : i32
    return %c0_i32, %c0_i32_0 : i32, i32
  }
  func.func @transform_11(%arg0: i32) -> (i32, i32) {
    %c0_i32 = arith.constant 0 : i32
    %c0_i32_0 = arith.constant 0 : i32
    %c0_i32_1 = arith.constant 0 : i32
    return %c0_i32, %c0_i32_0 : i32, i32
  }
  func.func @transform_12(%arg0: i32) -> (i32, i32) {
    %c0_i32 = arith.constant 0 : i32
    %c0_i32_0 = arith.constant 0 : i32
    %c0_i32_1 = arith.constant 0 : i32
    return %c0_i32, %c0_i32_0 : i32, i32
  }
  func.func @transform_13(%arg0: i32) -> (i32, i32) {
    %c0_i32 = arith.constant 0 : i32
    %c0_i32_0 = arith.constant 0 : i32
    %c0_i32_1 = arith.constant 0 : i32
    return %c0_i32, %c0_i32_0 : i32, i32
  }
  func.func @transform_14(%arg0: i32) -> (i32, i32) {
    %c0_i32 = arith.constant 0 : i32
    %c0_i32_0 = arith.constant 0 : i32
    %c0_i32_1 = arith.constant 0 : i32
    return %c0_i32, %c0_i32_0 : i32, i32
  }
  func.func @transform_15(%arg0: i32) -> (i32, i32) {
    %c0_i32 = arith.constant 0 : i32
    %c0_i32_0 = arith.constant 0 : i32
    %c0_i32_1 = arith.constant 0 : i32
    return %c0_i32, %c0_i32_0 : i32, i32
  }
  func.func @transform_16(%arg0: i32) -> (i32, i32) {
    %c0_i32 = arith.constant 0 : i32
    %c0_i32_0 = arith.constant 0 : i32
    %c0_i32_1 = arith.constant 0 : i32
    return %c0_i32, %c0_i32_0 : i32, i32
  }
  func.func @transform_17(%arg0: i32) -> (i32, i32) {
    %c0_i32 = arith.constant 0 : i32
    %c0_i32_0 = arith.constant 0 : i32
    %c0_i32_1 = arith.constant 0 : i32
    return %c0_i32, %c0_i32_0 : i32, i32
  }
  func.func @transform_18(%arg0: i32) -> (i32, i32) {
    %c0_i32 = arith.constant 0 : i32
    %c0_i32_0 = arith.constant 0 : i32
    %c0_i32_1 = arith.constant 0 : i32
    return %c0_i32, %c0_i32_0 : i32, i32
  }
  func.func @transform_19(%arg0: i32) -> (i32, i32) {
    %c0_i32 = arith.constant 0 : i32
    %c0_i32_0 = arith.constant 0 : i32
    return %arg0, %c0_i32 : i32, i32
  }
  func.func @transform_20(%arg0: i32) -> (i32, i32) {
    %c0_i32 = arith.constant 0 : i32
    %c0_i32_0 = arith.constant 0 : i32
    return %arg0, %c0_i32 : i32, i32
  }
}

</mosaic_0001>

<llo_original>
// kernel: custom-call
$region0: #{custom-call}
  %s0 = inlined_call_operand.hbm [shape: c64[2,4,16,16], index: 0, kind: input, shape index: {}]
  %s1 = inlined_call_operand.vmem [shape: f32[2,4,16,16], index: 1, kind: output, shape index: {}]
  $region1: #{custom-call} parent=0
    #allocation0 [shape = 's32[1]{0}', space=sflag, size = 0x4, scoped, tag = 'scoped memory for custom-call']
    %2 = vsyncpa [#allocation0], 0
    %s3 = sshll.u32 %s1, 4
    %s4 = int_to_ptr.vmem [resolvable:$true] %s3
    %6 = dma.hbm_to_vmem [thread:$0]  %s0, 2048, %s4, [#allocation0]
    %7 = dma.done [#allocation0], 2048
    %8 = vsyncpa [#allocation0], 1

// kernel: custom-call.1
$region0: #{custom-call.1}
  %s0 = inlined_call_operand.hbm [shape: c64[2,4,16,16], index: 0, kind: input, shape index: {}]
  %s1 = inlined_call_operand.vmem [shape: f32[2,4,16,16], index: 1, kind: output, shape index: {}]
  %s2 = scalar_lea.hbm %s0, 2048
  $region1: #{custom-call.1} parent=0
    #allocation0 [shape = 's32[1]{0}', space=sflag, size = 0x4, scoped, tag = 'scoped memory for custom-call.1']
    %3 = vsyncpa [#allocation0], 0
    %s4 = sshll.u32 %s1, 4
    %s5 = int_to_ptr.vmem [resolvable:$true] %s4
    %7 = dma.hbm_to_vmem [thread:$0]  %s2, 2048, %s5, [#allocation0]
    %8 = dma.done [#allocation0], 2048
    %9 = vsyncpa [#allocation0], 1

// kernel: tile.26
$region0: #{tile.26}
  #allocation0 [shape = 's32[1]{0}', space=sflag, size = 0x4, scoped, tag = 'scoped memory for tile.26']
  %s0 = inlined_call_operand.vmem [shape: f32[4], index: 0, kind: input, shape index: {}]
  %s1 = inlined_call_operand.vmem [shape: f32[32,4], index: 1, kind: output, shape index: {}]
  // Predicated region
  $region2: #{tile.26} parent=0 // pred_check
    _
  $region3: #{tile.26} parent=0 // pred_check_branch
    %3 = sbr.rel (0) target = $region5
  $region4: #{tile.26} parent=0 // pred_region
    _
  $region5: #{tile.26} parent=0 // pred_fallthru
    _
  %v4 = vld [vmem:[%s0] ss:$0 sm:$0xff]
  %5 = vst [vmem:[%s1] sm:$0xff] %v4
  %s6 = scalar_lea.vmem %s1, 8
  %7 = vst [vmem:[%s6] sm:$0xff] %v4
  %s8 = scalar_lea.vmem %s1, 16
  %9 = vst [vmem:[%s8] sm:$0xff] %v4
  %s10 = scalar_lea.vmem %s1, 24
  %11 = vst [vmem:[%s10] sm:$0xff] %v4

// kernel: tile.27
$region0: #{tile.27}
  %s0 = inlined_call_operand.vmem [shape: f32[32,4], index: 0, kind: input, shape index: {}]
  %s1 = inlined_call_operand.vmem [shape: f32[1,128], index: 1, kind: output, shape index: {}]
  $region1: #{tile.27} parent=0
    #allocation0 [shape = 'u8[4096]{0}', space=vmem, size = 0x1000, scoped, tag = 'scoped mem for output reshape']
    %v2 = vld [vmem:[%s0] sm:$0x1]
    %vm3 = vcmask 31744
    %4 = vst.msk [vmem:[#allocation0] sm:$0x1] %vm3, %v2
    %s5 = scalar_lea.vmem %s0, 31
    %v6 = vld [vmem:[%s5] sm:$0x1]
    %7 = vrot.lane.b32.xlu0 %v6, 124
    %v8 = vpop.permute.xlu0 %7
    %vm9 = vcmask 1048544
    %10 = vst.msk [vmem:[#allocation0] sm:$0x1] %vm9, %v8
    %s11 = scalar_lea.vmem %s0, 30
    %v12 = vld [vmem:[%s11] sm:$0x1]
    %13 = vrot.lane.b32.xlu0 %v12, 120
    %v14 = vpop.permute.xlu0 %13
    %vm15 = vcmask 1015744
    %16 = vst.msk [vmem:[#allocation0] sm:$0x1] %vm15, %v14
    %s17 = scalar_lea.vmem %s0, 29
    %v18 = vld [vmem:[%s17] sm:$0x1]
    %19 = vrot.lane.b32.xlu0 %v18, 116
    %v20 = vpop.permute.xlu0 %19
    %vm21 = vcmask 982944
    %22 = vst.msk [vmem:[#allocation0] sm:$0x1] %vm21, %v20
    %s23 = scalar_lea.vmem %s0, 28
    %v24 = vld [vmem:[%s23] sm:$0x1]
    %25 = vrot.lane.b32.xlu0 %v24, 112
    %v26 = vpop.permute.xlu0 %25
    %vm27 = vcmask 950144
    %28 = vst.msk [vmem:[#allocation0] sm:$0x1] %vm27, %v26
    %s29 = scalar_lea.vmem %s0, 27
    %v30 = vld [vmem:[%s29] sm:$0x1]
    %31 = vrot.lane.b32.xlu0 %v30, 108
    %v32 = vpop.permute.xlu0 %31
    %vm33 = vcmask 917344
    %34 = vst.msk [vmem:[#allocation0] sm:$0x1] %vm33, %v32
    %s35 = scalar_lea.vmem %s0, 26
    %v36 = vld [vmem:[%s35] sm:$0x1]
    %37 = vrot.lane.b32.xlu0 %v36, 104
    %v38 = vpop.permute.xlu0 %37
    %vm39 = vcmask 884544
    %40 = vst.msk [vmem:[#allocation0] sm:$0x1] %vm39, %v38
    %s41 = scalar_lea.vmem %s0, 25
    %v42 = vld [vmem:[%s41] sm:$0x1]
    %43 = vrot.lane.b32.xlu0 %v42, 100
    %v44 = vpop.permute.xlu0 %43
    %vm45 = vcmask 851744
    %46 = vst.msk [vmem:[#allocation0] sm:$0x1] %vm45, %v44
    %s47 = scalar_lea.vmem %s0, 24
    %v48 = vld [vmem:[%s47] sm:$0x1]
    %49 = vrot.lane.b32.xlu0 %v48, 96
    %v50 = vpop.permute.xlu0 %49
    %vm51 = vcmask 818944
    %52 = vst.msk [vmem:[#allocation0] sm:$0x1] %vm51, %v50
    %s53 = scalar_lea.vmem %s0, 23
    %v54 = vld [vmem:[%s53] sm:$0x1]
    %55 = vrot.lane.b32.xlu0 %v54, 92
    %v56 = vpop.permute.xlu0 %55
    %vm57 = vcmask 786144
    %58 = vst.msk [vmem:[#allocation0] sm:$0x1] %vm57, %v56
    %s59 = scalar_lea.vmem %s0, 22
    %v60 = vld [vmem:[%s59] sm:$0x1]
    %61 = vrot.lane.b32.xlu0 %v60, 88
    %v62 = vpop.permute.xlu0 %61
    %vm63 = vcmask 753344
    %64 = vst.msk [vmem:[#allocation0] sm:$0x1] %vm63, %v62
    %s65 = scalar_lea.vmem %s0, 21
    %v66 = vld [vmem:[%s65] sm:$0x1]
    %67 = vrot.lane.b32.xlu0 %v66, 84
    %v68 = vpop.permute.xlu0 %67
    %vm69 = vcmask 720544
    %70 = vst.msk [vmem:[#allocation0] sm:$0x1] %vm69, %v68
    %s71 = scalar_lea.vmem %s0, 20
    %v72 = vld [vmem:[%s71] sm:$0x1]
    %73 = vrot.lane.b32.xlu0 %v72, 80
    %v74 = vpop.permute.xlu0 %73
    %vm75 = vcmask 687744
    %76 = vst.msk [vmem:[#allocation0] sm:$0x1] %vm75, %v74
    %s77 = scalar_lea.vmem %s0, 19
    %v78 = vld [vmem:[%s77] sm:$0x1]
    %79 = vrot.lane.b32.xlu0 %v78, 76
    %v80 = vpop.permute.xlu0 %79
    %vm81 = vcmask 654944
    %82 = vst.msk [vmem:[#allocation0] sm:$0x1] %vm81, %v80
    %s83 = scalar_lea.vmem %s0, 18
    %v84 = vld [vmem:[%s83] sm:$0x1]
    %85 = vrot.lane.b32.xlu0 %v84, 72
    %v86 = vpop.permute.xlu0 %85
    %vm87 = vcmask 622144
    %88 = vst.msk [vmem:[#allocation0] sm:$0x1] %vm87, %v86
    %s89 = scalar_lea.vmem %s0, 17
    %v90 = vld [vmem:[%s89] sm:$0x1]
    %91 = vrot.lane.b32.xlu0 %v90, 68
    %v92 = vpop.permute.xlu0 %91
    %vm93 = vcmask 589344
    %94 = vst.msk [vmem:[#allocation0] sm:$0x1] %vm93, %v92
    %s95 = scalar_lea.vmem %s0, 16
    %v96 = vld [vmem:[%s95] sm:$0x1]
    %97 = vrot.lane.b32.xlu0 %v96, 64
    %v98 = vpop.permute.xlu0 %97
    %vm99 = vcmask 556544
    %100 = vst.msk [vmem:[#allocation0] sm:$0x1] %vm99, %v98
    %s101 = scalar_lea.vmem %s0, 15
    %v102 = vld [vmem:[%s101] sm:$0x1]
    %103 = vrot.lane.b32.xlu0 %v102, 60
    %v104 = vpop.permute.xlu0 %103
    %vm105 = vcmask 523744
    %106 = vst.msk [vmem:[#allocation0] sm:$0x1] %vm105, %v104
    %s107 = scalar_lea.vmem %s0, 14
    %v108 = vld [vmem:[%s107] sm:$0x1]
    %109 = vrot.lane.b32.xlu0 %v108, 56
    %v110 = vpop.permute.xlu0 %109
    %vm111 = vcmask 490944
    %112 = vst.msk [vmem:[#allocation0] sm:$0x1] %vm111, %v110
    %s113 = scalar_lea.vmem %s0, 13
    %v114 = vld [vmem:[%s113] sm:$0x1]
    %115 = vrot.lane.b32.xlu0 %v114, 52
    %v116 = vpop.permute.xlu0 %115
    %vm117 = vcmask 458144
    %118 = vst.msk [vmem:[#allocation0] sm:$0x1] %vm117, %v116
    %s119 = scalar_lea.vmem %s0, 12
    %v120 = vld [vmem:[%s119] sm:$0x1]
    %121 = vrot.lane.b32.xlu0 %v120, 48
    %v122 = vpop.permute.xlu0 %121
    %vm123 = vcmask 425344
    %124 = vst.msk [vmem:[#allocation0] sm:$0x1] %vm123, %v122
    %s125 = scalar_lea.vmem %s0, 11
    %v126 = vld [vmem:[%s125] sm:$0x1]
    %127 = vrot.lane.b32.xlu0 %v126, 44
    %v128 = vpop.permute.xlu0 %127
    %vm129 = vcmask 392544
    %130 = vst.msk [vmem:[#allocation0] sm:$0x1] %vm129, %v128
    %s131 = scalar_lea.vmem %s0, 10
    %v132 = vld [vmem:[%s131] sm:$0x1]
    %133 = vrot.lane.b32.xlu0 %v132, 40
    %v134 = vpop.permute.xlu0 %133
    %vm135 = vcmask 359744
    %136 = vst.msk [vmem:[#allocation0] sm:$0x1] %vm135, %v134
    %s137 = scalar_lea.vmem %s0, 9
    %v138 = vld [vmem:[%s137] sm:$0x1]
    %139 = vrot.lane.b32.xlu0 %v138, 36
    %v140 = vpop.permute.xlu0 %139
    %vm141 = vcmask 326944
    %142 = vst.msk [vmem:[#allocation0] sm:$0x1] %vm141, %v140
    %s143 = scalar_lea.vmem %s0, 8
    %v144 = vld [vmem:[%s143] sm:$0x1]
    %145 = vrot.lane.b32.xlu0 %v144, 32
    %v146 = vpop.permute.xlu0 %145
    %vm147 = vcmask 294144
    %148 = vst.msk [vmem:[#allocation0] sm:$0x1] %vm147, %v146
    %s149 = scalar_lea.vmem %s0, 7
    %v150 = vld [vmem:[%s149] sm:$0x1]
    %151 = vrot.lane.b32.xlu0 %v150, 28
    %v152 = vpop.permute.xlu0 %151
    %vm153 = vcmask 261344
    %154 = vst.msk [vmem:[#allocation0] sm:$0x1] %vm153, %v152
    %s155 = scalar_lea.vmem %s0, 6
    %v156 = vld [vmem:[%s155] sm:$0x1]
    %157 = vrot.lane.b32.xlu0 %v156, 24
    %v158 = vpop.permute.xlu0 %157
    %vm159 = vcmask 228544
    %160 = vst.msk [vmem:[#allocation0] sm:$0x1] %vm159, %v158
    %s161 = scalar_lea.vmem %s0, 5
    %v162 = vld [vmem:[%s161] sm:$0x1]
    %163 = vrot.lane.b32.xlu0 %v162, 20
    %v164 = vpop.permute.xlu0 %163
    %vm165 = vcmask 195744
    %166 = vst.msk [vmem:[#allocation0] sm:$0x1] %vm165, %v164
    %s167 = scalar_lea.vmem %s0, 4
    %v168 = vld [vmem:[%s167] sm:$0x1]
    %169 = vrot.lane.b32.xlu0 %v168, 16
    %v170 = vpop.permute.xlu0 %169
    %vm171 = vcmask 162944
    %172 = vst.msk [vmem:[#allocation0] sm:$0x1] %vm171, %v170
    %s173 = scalar_lea.vmem %s0, 3
    %v174 = vld [vmem:[%s173] sm:$0x1]
    %175 = vrot.lane.b32.xlu0 %v174, 12
    %v176 = vpop.permute.xlu0 %175
    %vm177 = vcmask 130144
    %178 = vst.msk [vmem:[#allocation0] sm:$0x1] %vm177, %v176
    %s179 = scalar_lea.vmem %s0, 2
    %v180 = vld [vmem:[%s179] sm:$0x1]
    %181 = vrot.lane.b32.xlu0 %v180, 8
    %v182 = vpop.permute.xlu0 %181
    %vm183 = vcmask 97344
    %184 = vst.msk [vmem:[#allocation0] sm:$0x1] %vm183, %v182
    %s185 = scalar_lea.vmem %s0, 1
    %v186 = vld [vmem:[%s185] sm:$0x1]
    %187 = vrot.lane.b32.xlu0 %v186, 4
    %v188 = vpop.permute.xlu0 %187
    %vm189 = vcmask 64544
    %190 = vst.msk [vmem:[#allocation0] sm:$0x1] %vm189, %v188
    %s192 = sshllo.u32 0, 1
    %v194 = vld [vmem:[#allocation0] sm:%s192]
    %s195 = sshllo.u32 0, 1
    %196 = vst [vmem:[%s1] sm:%s195] %v194

// kernel: custom-call.2
$region0: #{custom-call.2}
  %s0 = inlined_call_operand.vmem [shape: f32[2,4,16,16], index: 0, kind: input, shape index: {}]
  %s1 = inlined_call_operand.vmem [shape: f32[2,4,16,16], index: 1, kind: input, shape index: {}]
  %s2 = inlined_call_operand.vmem [shape: c64[2,4,16,16], index: 2, kind: output, shape index: {}]
  %s4 = scalar_lea.vmem %s2, 512
  %v5 = vld [vmem:[%s0] sm:$0xff]
  %6 = vst [vmem:[%s2] sm:$0xff] %v5
  %s7 = scalar_lea.vmem %s2, 8
  %s8 = scalar_lea.vmem %s0, 8
  %v9 = vld [vmem:[%s8] sm:$0xff]
  %10 = vst [vmem:[%s7] sm:$0xff] %v9
  %s11 = scalar_lea.vmem %s2, 16
  %s12 = scalar_lea.vmem %s0, 16
  %v13 = vld [vmem:[%s12] sm:$0xff]
  %14 = vst [vmem:[%s11] sm:$0xff] %v13
  %s15 = scalar_lea.vmem %s2, 24
  %s16 = scalar_lea.vmem %s0, 24
  %v17 = vld [vmem:[%s16] sm:$0xff]
  %18 = vst [vmem:[%s15] sm:$0xff] %v17
  %s19 = scalar_lea.vmem %s2, 32
  %s20 = scalar_lea.vmem %s0, 32
  %v21 = vld [vmem:[%s20] sm:$0xff]
  %22 = vst [vmem:[%s19] sm:$0xff] %v21
  %s23 = scalar_lea.vmem %s2, 40
  %s24 = scalar_lea.vmem %s0, 40
  %v25 = vld [vmem:[%s24] sm:$0xff]
  %26 = vst [vmem:[%s23] sm:$0xff] %v25
  %s27 = scalar_lea.vmem %s2, 48
  %s28 = scalar_lea.vmem %s0, 48
  %v29 = vld [vmem:[%s28] sm:$0xff]
  %30 = vst [vmem:[%s27] sm:$0xff] %v29
  %s31 = scalar_lea.vmem %s2, 56
  %s32 = scalar_lea.vmem %s0, 56
  %v33 = vld [vmem:[%s32] sm:$0xff]
  %34 = vst [vmem:[%s31] sm:$0xff] %v33
  %s35 = scalar_lea.vmem %s2, 64
  %s36 = scalar_lea.vmem %s0, 64
  %v37 = vld [vmem:[%s36] sm:$0xff]
  %38 = vst [vmem:[%s35] sm:$0xff] %v37
  %s39 = scalar_lea.vmem %s2, 72
  %s40 = scalar_lea.vmem %s0, 72
  %v41 = vld [vmem:[%s40] sm:$0xff]
  %42 = vst [vmem:[%s39] sm:$0xff] %v41
  %s43 = scalar_lea.vmem %s2, 80
  %s44 = scalar_lea.vmem %s0, 80
  %v45 = vld [vmem:[%s44] sm:$0xff]
  %46 = vst [vmem:[%s43] sm:$0xff] %v45
  %s47 = scalar_lea.vmem %s2, 88
  %s48 = scalar_lea.vmem %s0, 88
  %v49 = vld [vmem:[%s48] sm:$0xff]
  %50 = vst [vmem:[%s47] sm:$0xff] %v49
  %s51 = scalar_lea.vmem %s2, 96
  %s52 = scalar_lea.vmem %s0, 96
  %v53 = vld [vmem:[%s52] sm:$0xff]
  %54 = vst [vmem:[%s51] sm:$0xff] %v53
  %s55 = scalar_lea.vmem %s2, 104
  %s56 = scalar_lea.vmem %s0, 104
  %v57 = vld [vmem:[%s56] sm:$0xff]
  %58 = vst [vmem:[%s55] sm:$0xff] %v57
  %s59 = scalar_lea.vmem %s2, 112
  %s60 = scalar_lea.vmem %s0, 112
  %v61 = vld [vmem:[%s60] sm:$0xff]
  %62 = vst [vmem:[%s59] sm:$0xff] %v61
  %s63 = scalar_lea.vmem %s2, 120
  %s64 = scalar_lea.vmem %s0, 120
  %v65 = vld [vmem:[%s64] sm:$0xff]
  %66 = vst [vmem:[%s63] sm:$0xff] %v65
  %s67 = scalar_lea.vmem %s2, 128
  %s68 = scalar_lea.vmem %s0, 128
  %v69 = vld [vmem:[%s68] sm:$0xff]
  %70 = vst [vmem:[%s67] sm:$0xff] %v69
  %s71 = scalar_lea.vmem %s2, 136
  %s72 = scalar_lea.vmem %s0, 136
  %v73 = vld [vmem:[%s72] sm:$0xff]
  %74 = vst [vmem:[%s71] sm:$0xff] %v73
  %s75 = scalar_lea.vmem %s2, 144
  %s76 = scalar_lea.vmem %s0, 144
  %v77 = vld [vmem:[%s76] sm:$0xff]
  %78 = vst [vmem:[%s75] sm:$0xff] %v77
  %s79 = scalar_lea.vmem %s2, 152
  %s80 = scalar_lea.vmem %s0, 152
  %v81 = vld [vmem:[%s80] sm:$0xff]
  %82 = vst [vmem:[%s79] sm:$0xff] %v81
  %s83 = scalar_lea.vmem %s2, 160
  %s84 = scalar_lea.vmem %s0, 160
  %v85 = vld [vmem:[%s84] sm:$0xff]
  %86 = vst [vmem:[%s83] sm:$0xff] %v85
  %s87 = scalar_lea.vmem %s2, 168
  %s88 = scalar_lea.vmem %s0, 168
  %v89 = vld [vmem:[%s88] sm:$0xff]
  %90 = vst [vmem:[%s87] sm:$0xff] %v89
  %s91 = scalar_lea.vmem %s2, 176
  %s92 = scalar_lea.vmem %s0, 176
  %v93 = vld [vmem:[%s92] sm:$0xff]
  %94 = vst [vmem:[%s91] sm:$0xff] %v93
  %s95 = scalar_lea.vmem %s2, 184
  %s96 = scalar_lea.vmem %s0, 184
  %v97 = vld [vmem:[%s96] sm:$0xff]
  %98 = vst [vmem:[%s95] sm:$0xff] %v97
  %s99 = scalar_lea.vmem %s2, 192
  %s100 = scalar_lea.vmem %s0, 192
  %v101 = vld [vmem:[%s100] sm:$0xff]
  %102 = vst [vmem:[%s99] sm:$0xff] %v101
  %s103 = scalar_lea.vmem %s2, 200
  %s104 = scalar_lea.vmem %s0, 200
  %v105 = vld [vmem:[%s104] sm:$0xff]
  %106 = vst [vmem:[%s103] sm:$0xff] %v105
  %s107 = scalar_lea.vmem %s2, 208
  %s108 = scalar_lea.vmem %s0, 208
  %v109 = vld [vmem:[%s108] sm:$0xff]
  %110 = vst [vmem:[%s107] sm:$0xff] %v109
  %s111 = scalar_lea.vmem %s2, 216
  %s112 = scalar_lea.vmem %s0, 216
  %v113 = vld [vmem:[%s112] sm:$0xff]
  %114 = vst [vmem:[%s111] sm:$0xff] %v113
  %s115 = scalar_lea.vmem %s2, 224
  %s116 = scalar_lea.vmem %s0, 224
  %v117 = vld [vmem:[%s116] sm:$0xff]
  %118 = vst [vmem:[%s115] sm:$0xff] %v117
  %s119 = scalar_lea.vmem %s2, 232
  %s120 = scalar_lea.vmem %s0, 232
  %v121 = vld [vmem:[%s120] sm:$0xff]
  %122 = vst [vmem:[%s119] sm:$0xff] %v121
  %s123 = scalar_lea.vmem %s2, 240
  %s124 = scalar_lea.vmem %s0, 240
  %v125 = vld [vmem:[%s124] sm:$0xff]
  %126 = vst [vmem:[%s123] sm:$0xff] %v125
  %s127 = scalar_lea.vmem %s2, 248
  %s128 = scalar_lea.vmem %s0, 248
  %v129 = vld [vmem:[%s128] sm:$0xff]
  %130 = vst [vmem:[%s127] sm:$0xff] %v129
  %s131 = scalar_lea.vmem %s2, 256
  %s132 = scalar_lea.vmem %s0, 256
  %v133 = vld [vmem:[%s132] sm:$0xff]
  %134 = vst [vmem:[%s131] sm:$0xff] %v133
  %s135 = scalar_lea.vmem %s2, 264
  %s136 = scalar_lea.vmem %s0, 264
  %v137 = vld [vmem:[%s136] sm:$0xff]
  %138 = vst [vmem:[%s135] sm:$0xff] %v137
  %s139 = scalar_lea.vmem %s2, 272
  %s140 = scalar_lea.vmem %s0, 272
  %v141 = vld [vmem:[%s140] sm:$0xff]
  %142 = vst [vmem:[%s139] sm:$0xff] %v141
  %s143 = scalar_lea.vmem %s2, 280
  %s144 = scalar_lea.vmem %s0, 280
  %v145 = vld [vmem:[%s144] sm:$0xff]
  %146 = vst [vmem:[%s143] sm:$0xff] %v145
  %s147 = scalar_lea.vmem %s2, 288
  %s148 = scalar_lea.vmem %s0, 288
  %v149 = vld [vmem:[%s148] sm:$0xff]
  %150 = vst [vmem:[%s147] sm:$0xff] %v149
  %s151 = scalar_lea.vmem %s2, 296
  %s152 = scalar_lea.vmem %s0, 296
  %v153 = vld [vmem:[%s152] sm:$0xff]
  %154 = vst [vmem:[%s151] sm:$0xff] %v153
  %s155 = scalar_lea.vmem %s2, 304
  %s156 = scalar_lea.vmem %s0, 304
  %v157 = vld [vmem:[%s156] sm:$0xff]
  %158 = vst [vmem:[%s155] sm:$0xff] %v157
  %s159 = scalar_lea.vmem %s2, 312
  %s160 = scalar_lea.vmem %s0, 312
  %v161 = vld [vmem:[%s160] sm:$0xff]
  %162 = vst [vmem:[%s159] sm:$0xff] %v161
  %s163 = scalar_lea.vmem %s2, 320
  %s164 = scalar_lea.vmem %s0, 320
  %v165 = vld [vmem:[%s164] sm:$0xff]
  %166 = vst [vmem:[%s163] sm:$0xff] %v165
  %s167 = scalar_lea.vmem %s2, 328
  %s168 = scalar_lea.vmem %s0, 328
  %v169 = vld [vmem:[%s168] sm:$0xff]
  %170 = vst [vmem:[%s167] sm:$0xff] %v169
  %s171 = scalar_lea.vmem %s2, 336
  %s172 = scalar_lea.vmem %s0, 336
  %v173 = vld [vmem:[%s172] sm:$0xff]
  %174 = vst [vmem:[%s171] sm:$0xff] %v173
  %s175 = scalar_lea.vmem %s2, 344
  %s176 = scalar_lea.vmem %s0, 344
  %v177 = vld [vmem:[%s176] sm:$0xff]
  %178 = vst [vmem:[%s175] sm:$0xff] %v177
  %s179 = scalar_lea.vmem %s2, 352
  %s180 = scalar_lea.vmem %s0, 352
  %v181 = vld [vmem:[%s180] sm:$0xff]
  %182 = vst [vmem:[%s179] sm:$0xff] %v181
  %s183 = scalar_lea.vmem %s2, 360
  %s184 = scalar_lea.vmem %s0, 360
  %v185 = vld [vmem:[%s184] sm:$0xff]
  %186 = vst [vmem:[%s183] sm:$0xff] %v185
  %s187 = scalar_lea.vmem %s2, 368
  %s188 = scalar_lea.vmem %s0, 368
  %v189 = vld [vmem:[%s188] sm:$0xff]
  %190 = vst [vmem:[%s187] sm:$0xff] %v189
  %s191 = scalar_lea.vmem %s2, 376
  %s192 = scalar_lea.vmem %s0, 376
  %v193 = vld [vmem:[%s192] sm:$0xff]
  %194 = vst [vmem:[%s191] sm:$0xff] %v193
  %s195 = scalar_lea.vmem %s2, 384
  %s196 = scalar_lea.vmem %s0, 384
  %v197 = vld [vmem:[%s196] sm:$0xff]
  %198 = vst [vmem:[%s195] sm:$0xff] %v197
  %s199 = scalar_lea.vmem %s2, 392
  %s200 = scalar_lea.vmem %s0, 392
  %v201 = vld [vmem:[%s200] sm:$0xff]
  %202 = vst [vmem:[%s199] sm:$0xff] %v201
  %s203 = scalar_lea.vmem %s2, 400
  %s204 = scalar_lea.vmem %s0, 400
  %v205 = vld [vmem:[%s204] sm:$0xff]
  %206 = vst [vmem:[%s203] sm:$0xff] %v205
  %s207 = scalar_lea.vmem %s2, 408
  %s208 = scalar_lea.vmem %s0, 408
  %v209 = vld [vmem:[%s208] sm:$0xff]
  %210 = vst [vmem:[%s207] sm:$0xff] %v209
  %s211 = scalar_lea.vmem %s2, 416
  %s212 = scalar_lea.vmem %s0, 416
  %v213 = vld [vmem:[%s212] sm:$0xff]
  %214 = vst [vmem:[%s211] sm:$0xff] %v213
  %s215 = scalar_lea.vmem %s2, 424
  %s216 = scalar_lea.vmem %s0, 424
  %v217 = vld [vmem:[%s216] sm:$0xff]
  %218 = vst [vmem:[%s215] sm:$0xff] %v217
  %s219 = scalar_lea.vmem %s2, 432
  %s220 = scalar_lea.vmem %s0, 432
  %v221 = vld [vmem:[%s220] sm:$0xff]
  %222 = vst [vmem:[%s219] sm:$0xff] %v221
  %s223 = scalar_lea.vmem %s2, 440
  %s224 = scalar_lea.vmem %s0, 440
  %v225 = vld [vmem:[%s224] sm:$0xff]
  %226 = vst [vmem:[%s223] sm:$0xff] %v225
  %s227 = scalar_lea.vmem %s2, 448
  %s228 = scalar_lea.vmem %s0, 448
  %v229 = vld [vmem:[%s228] sm:$0xff]
  %230 = vst [vmem:[%s227] sm:$0xff] %v229
  %s231 = scalar_lea.vmem %s2, 456
  %s232 = scalar_lea.vmem %s0, 456
  %v233 = vld [vmem:[%s232] sm:$0xff]
  %234 = vst [vmem:[%s231] sm:$0xff] %v233
  %s235 = scalar_lea.vmem %s2, 464
  %s236 = scalar_lea.vmem %s0, 464
  %v237 = vld [vmem:[%s236] sm:$0xff]
  %238 = vst [vmem:[%s235] sm:$0xff] %v237
  %s239 = scalar_lea.vmem %s2, 472
  %s240 = scalar_lea.vmem %s0, 472
  %v241 = vld [vmem:[%s240] sm:$0xff]
  %242 = vst [vmem:[%s239] sm:$0xff] %v241
  %s243 = scalar_lea.vmem %s2, 480
  %s244 = scalar_lea.vmem %s0, 480
  %v245 = vld [vmem:[%s244] sm:$0xff]
  %246 = vst [vmem:[%s243] sm:$0xff] %v245
  %s247 = scalar_lea.vmem %s2, 488
  %s248 = scalar_lea.vmem %s0, 488
  %v249 = vld [vmem:[%s248] sm:$0xff]
  %250 = vst [vmem:[%s247] sm:$0xff] %v249
  %s251 = scalar_lea.vmem %s2, 496
  %s252 = scalar_lea.vmem %s0, 496
  %v253 = vld [vmem:[%s252] sm:$0xff]
  %254 = vst [vmem:[%s251] sm:$0xff] %v253
  %s255 = scalar_lea.vmem %s2, 504
  %s256 = scalar_lea.vmem %s0, 504
  %v257 = vld [vmem:[%s256] sm:$0xff]
  %258 = vst [vmem:[%s255] sm:$0xff] %v257
  %v259 = vld [vmem:[%s1] sm:$0xff]
  %260 = vst [vmem:[%s4] sm:$0xff] %v259
  %s261 = scalar_lea.vmem %s4, 8
  %s262 = scalar_lea.vmem %s1, 8
  %v263 = vld [vmem:[%s262] sm:$0xff]
  %264 = vst [vmem:[%s261] sm:$0xff] %v263
  %s265 = scalar_lea.vmem %s4, 16
  %s266 = scalar_lea.vmem %s1, 16
  %v267 = vld [vmem:[%s266] sm:$0xff]
  %268 = vst [vmem:[%s265] sm:$0xff] %v267
  %s269 = scalar_lea.vmem %s4, 24
  %s270 = scalar_lea.vmem %s1, 24
  %v271 = vld [vmem:[%s270] sm:$0xff]
  %272 = vst [vmem:[%s269] sm:$0xff] %v271
  %s273 = scalar_lea.vmem %s4, 32
  %s274 = scalar_lea.vmem %s1, 32
  %v275 = vld [vmem:[%s274] sm:$0xff]
  %276 = vst [vmem:[%s273] sm:$0xff] %v275
  %s277 = scalar_lea.vmem %s4, 40
  %s278 = scalar_lea.vmem %s1, 40
  %v279 = vld [vmem:[%s278] sm:$0xff]
  %280 = vst [vmem:[%s277] sm:$0xff] %v279
  %s281 = scalar_lea.vmem %s4, 48
  %s282 = scalar_lea.vmem %s1, 48
  %v283 = vld [vmem:[%s282] sm:$0xff]
  %284 = vst [vmem:[%s281] sm:$0xff] %v283
  %s285 = scalar_lea.vmem %s4, 56
  %s286 = scalar_lea.vmem %s1, 56
  %v287 = vld [vmem:[%s286] sm:$0xff]
  %288 = vst [vmem:[%s285] sm:$0xff] %v287
  %s289 = scalar_lea.vmem %s4, 64
  %s290 = scalar_lea.vmem %s1, 64
  %v291 = vld [vmem:[%s290] sm:$0xff]
  %292 = vst [vmem:[%s289] sm:$0xff] %v291
  %s293 = scalar_lea.vmem %s4, 72
  %s294 = scalar_lea.vmem %s1, 72
  %v295 = vld [vmem:[%s294] sm:$0xff]
  %296 = vst [vmem:[%s293] sm:$0xff] %v295
  %s297 = scalar_lea.vmem %s4, 80
  %s298 = scalar_lea.vmem %s1, 80
  %v299 = vld [vmem:[%s298] sm:$0xff]
  %300 = vst [vmem:[%s297] sm:$0xff] %v299
  %s301 = scalar_lea.vmem %s4, 88
  %s302 = scalar_lea.vmem %s1, 88
  %v303 = vld [vmem:[%s302] sm:$0xff]
  %304 = vst [vmem:[%s301] sm:$0xff] %v303
  %s305 = scalar_lea.vmem %s4, 96
  %s306 = scalar_lea.vmem %s1, 96
  %v307 = vld [vmem:[%s306] sm:$0xff]
  %308 = vst [vmem:[%s305] sm:$0xff] %v307
  %s309 = scalar_lea.vmem %s4, 104
  %s310 = scalar_lea.vmem %s1, 104
  %v311 = vld [vmem:[%s310] sm:$0xff]
  %312 = vst [vmem:[%s309] sm:$0xff] %v311
  %s313 = scalar_lea.vmem %s4, 112
  %s314 = scalar_lea.vmem %s1, 112
  %v315 = vld [vmem:[%s314] sm:$0xff]
  %316 = vst [vmem:[%s313] sm:$0xff] %v315
  %s317 = scalar_lea.vmem %s4, 120
  %s318 = scalar_lea.vmem %s1, 120
  %v319 = vld [vmem:[%s318] sm:$0xff]
  %320 = vst [vmem:[%s317] sm:$0xff] %v319
  %s321 = scalar_lea.vmem %s4, 128
  %s322 = scalar_lea.vmem %s1, 128
  %v323 = vld [vmem:[%s322] sm:$0xff]
  %324 = vst [vmem:[%s321] sm:$0xff] %v323
  %s325 = scalar_lea.vmem %s4, 136
  %s326 = scalar_lea.vmem %s1, 136
  %v327 = vld [vmem:[%s326] sm:$0xff]
  %328 = vst [vmem:[%s325] sm:$0xff] %v327
  %s329 = scalar_lea.vmem %s4, 144
  %s330 = scalar_lea.vmem %s1, 144
  %v331 = vld [vmem:[%s330] sm:$0xff]
  %332 = vst [vmem:[%s329] sm:$0xff] %v331
  %s333 = scalar_lea.vmem %s4, 152
  %s334 = scalar_lea.vmem %s1, 152
  %v335 = vld [vmem:[%s334] sm:$0xff]
  %336 = vst [vmem:[%s333] sm:$0xff] %v335
  %s337 = scalar_lea.vmem %s4, 160
  %s338 = scalar_lea.vmem %s1, 160
  %v339 = vld [vmem:[%s338] sm:$0xff]
  %340 = vst [vmem:[%s337] sm:$0xff] %v339
  %s341 = scalar_lea.vmem %s4, 168
  %s342 = scalar_lea.vmem %s1, 168
  %v343 = vld [vmem:[%s342] sm:$0xff]
  %344 = vst [vmem:[%s341] sm:$0xff] %v343
  %s345 = scalar_lea.vmem %s4, 176
  %s346 = scalar_lea.vmem %s1, 176
  %v347 = vld [vmem:[%s346] sm:$0xff]
  %348 = vst [vmem:[%s345] sm:$0xff] %v347
  %s349 = scalar_lea.vmem %s4, 184
  %s350 = scalar_lea.vmem %s1, 184
  %v351 = vld [vmem:[%s350] sm:$0xff]
  %352 = vst [vmem:[%s349] sm:$0xff] %v351
  %s353 = scalar_lea.vmem %s4, 192
  %s354 = scalar_lea.vmem %s1, 192
  %v355 = vld [vmem:[%s354] sm:$0xff]
  %356 = vst [vmem:[%s353] sm:$0xff] %v355
  %s357 = scalar_lea.vmem %s4, 200
  %s358 = scalar_lea.vmem %s1, 200
  %v359 = vld [vmem:[%s358] sm:$0xff]
  %360 = vst [vmem:[%s357] sm:$0xff] %v359
  %s361 = scalar_lea.vmem %s4, 208
  %s362 = scalar_lea.vmem %s1, 208
  %v363 = vld [vmem:[%s362] sm:$0xff]
  %364 = vst [vmem:[%s361] sm:$0xff] %v363
  %s365 = scalar_lea.vmem %s4, 216
  %s366 = scalar_lea.vmem %s1, 216
  %v367 = vld [vmem:[%s366] sm:$0xff]
  %368 = vst [vmem:[%s365] sm:$0xff] %v367
  %s369 = scalar_lea.vmem %s4, 224
  %s370 = scalar_lea.vmem %s1, 224
  %v371 = vld [vmem:[%s370] sm:$0xff]
  %372 = vst [vmem:[%s369] sm:$0xff] %v371
  %s373 = scalar_lea.vmem %s4, 232
  %s374 = scalar_lea.vmem %s1, 232
  %v375 = vld [vmem:[%s374] sm:$0xff]
  %376 = vst [vmem:[%s373] sm:$0xff] %v375
  %s377 = scalar_lea.vmem %s4, 240
  %s378 = scalar_lea.vmem %s1, 240
  %v379 = vld [vmem:[%s378] sm:$0xff]
  %380 = vst [vmem:[%s377] sm:$0xff] %v379
  %s381 = scalar_lea.vmem %s4, 248
  %s382 = scalar_lea.vmem %s1, 248
  %v383 = vld [vmem:[%s382] sm:$0xff]
  %384 = vst [vmem:[%s381] sm:$0xff] %v383
  %s385 = scalar_lea.vmem %s4, 256
  %s386 = scalar_lea.vmem %s1, 256
  %v387 = vld [vmem:[%s386] sm:$0xff]
  %388 = vst [vmem:[%s385] sm:$0xff] %v387
  %s389 = scalar_lea.vmem %s4, 264
  %s390 = scalar_lea.vmem %s1, 264
  %v391 = vld [vmem:[%s390] sm:$0xff]
  %392 = vst [vmem:[%s389] sm:$0xff] %v391
  %s393 = scalar_lea.vmem %s4, 272
  %s394 = scalar_lea.vmem %s1, 272
  %v395 = vld [vmem:[%s394] sm:$0xff]
  %396 = vst [vmem:[%s393] sm:$0xff] %v395
  %s397 = scalar_lea.vmem %s4, 280
  %s398 = scalar_lea.vmem %s1, 280
  %v399 = vld [vmem:[%s398] sm:$0xff]
  %400 = vst [vmem:[%s397] sm:$0xff] %v399
  %s401 = scalar_lea.vmem %s4, 288
  %s402 = scalar_lea.vmem %s1, 288
  %v403 = vld [vmem:[%s402] sm:$0xff]
  %404 = vst [vmem:[%s401] sm:$0xff] %v403
  %s405 = scalar_lea.vmem %s4, 296
  %s406 = scalar_lea.vmem %s1, 296
  %v407 = vld [vmem:[%s406] sm:$0xff]
  %408 = vst [vmem:[%s405] sm:$0xff] %v407
  %s409 = scalar_lea.vmem %s4, 304
  %s410 = scalar_lea.vmem %s1, 304
  %v411 = vld [vmem:[%s410] sm:$0xff]
  %412 = vst [vmem:[%s409] sm:$0xff] %v411
  %s413 = scalar_lea.vmem %s4, 312
  %s414 = scalar_lea.vmem %s1, 312
  %v415 = vld [vmem:[%s414] sm:$0xff]
  %416 = vst [vmem:[%s413] sm:$0xff] %v415
  %s417 = scalar_lea.vmem %s4, 320
  %s418 = scalar_lea.vmem %s1, 320
  %v419 = vld [vmem:[%s418] sm:$0xff]
  %420 = vst [vmem:[%s417] sm:$0xff] %v419
  %s421 = scalar_lea.vmem %s4, 328
  %s422 = scalar_lea.vmem %s1, 328
  %v423 = vld [vmem:[%s422] sm:$0xff]
  %424 = vst [vmem:[%s421] sm:$0xff] %v423
  %s425 = scalar_lea.vmem %s4, 336
  %s426 = scalar_lea.vmem %s1, 336
  %v427 = vld [vmem:[%s426] sm:$0xff]
  %428 = vst [vmem:[%s425] sm:$0xff] %v427
  %s429 = scalar_lea.vmem %s4, 344
  %s430 = scalar_lea.vmem %s1, 344
  %v431 = vld [vmem:[%s430] sm:$0xff]
  %432 = vst [vmem:[%s429] sm:$0xff] %v431
  %s433 = scalar_lea.vmem %s4, 352
  %s434 = scalar_lea.vmem %s1, 352
  %v435 = vld [vmem:[%s434] sm:$0xff]
  %436 = vst [vmem:[%s433] sm:$0xff] %v435
  %s437 = scalar_lea.vmem %s4, 360
  %s438 = scalar_lea.vmem %s1, 360
  %v439 = vld [vmem:[%s438] sm:$0xff]
  %440 = vst [vmem:[%s437] sm:$0xff] %v439
  %s441 = scalar_lea.vmem %s4, 368
  %s442 = scalar_lea.vmem %s1, 368
  %v443 = vld [vmem:[%s442] sm:$0xff]
  %444 = vst [vmem:[%s441] sm:$0xff] %v443
  %s445 = scalar_lea.vmem %s4, 376
  %s446 = scalar_lea.vmem %s1, 376
  %v447 = vld [vmem:[%s446] sm:$0xff]
  %448 = vst [vmem:[%s445] sm:$0xff] %v447
  %s449 = scalar_lea.vmem %s4, 384
  %s450 = scalar_lea.vmem %s1, 384
  %v451 = vld [vmem:[%s450] sm:$0xff]
  %452 = vst [vmem:[%s449] sm:$0xff] %v451
  %s453 = scalar_lea.vmem %s4, 392
  %s454 = scalar_lea.vmem %s1, 392
  %v455 = vld [vmem:[%s454] sm:$0xff]
  %456 = vst [vmem:[%s453] sm:$0xff] %v455
  %s457 = scalar_lea.vmem %s4, 400
  %s458 = scalar_lea.vmem %s1, 400
  %v459 = vld [vmem:[%s458] sm:$0xff]
  %460 = vst [vmem:[%s457] sm:$0xff] %v459
  %s461 = scalar_lea.vmem %s4, 408
  %s462 = scalar_lea.vmem %s1, 408
  %v463 = vld [vmem:[%s462] sm:$0xff]
  %464 = vst [vmem:[%s461] sm:$0xff] %v463
  %s465 = scalar_lea.vmem %s4, 416
  %s466 = scalar_lea.vmem %s1, 416
  %v467 = vld [vmem:[%s466] sm:$0xff]
  %468 = vst [vmem:[%s465] sm:$0xff] %v467
  %s469 = scalar_lea.vmem %s4, 424
  %s470 = scalar_lea.vmem %s1, 424
  %v471 = vld [vmem:[%s470] sm:$0xff]
  %472 = vst [vmem:[%s469] sm:$0xff] %v471
  %s473 = scalar_lea.vmem %s4, 432
  %s474 = scalar_lea.vmem %s1, 432
  %v475 = vld [vmem:[%s474] sm:$0xff]
  %476 = vst [vmem:[%s473] sm:$0xff] %v475
  %s477 = scalar_lea.vmem %s4, 440
  %s478 = scalar_lea.vmem %s1, 440
  %v479 = vld [vmem:[%s478] sm:$0xff]
  %480 = vst [vmem:[%s477] sm:$0xff] %v479
  %s481 = scalar_lea.vmem %s4, 448
  %s482 = scalar_lea.vmem %s1, 448
  %v483 = vld [vmem:[%s482] sm:$0xff]
  %484 = vst [vmem:[%s481] sm:$0xff] %v483
  %s485 = scalar_lea.vmem %s4, 456
  %s486 = scalar_lea.vmem %s1, 456
  %v487 = vld [vmem:[%s486] sm:$0xff]
  %488 = vst [vmem:[%s485] sm:$0xff] %v487
  %s489 = scalar_lea.vmem %s4, 464
  %s490 = scalar_lea.vmem %s1, 464
  %v491 = vld [vmem:[%s490] sm:$0xff]
  %492 = vst [vmem:[%s489] sm:$0xff] %v491
  %s493 = scalar_lea.vmem %s4, 472
  %s494 = scalar_lea.vmem %s1, 472
  %v495 = vld [vmem:[%s494] sm:$0xff]
  %496 = vst [vmem:[%s493] sm:$0xff] %v495
  %s497 = scalar_lea.vmem %s4, 480
  %s498 = scalar_lea.vmem %s1, 480
  %v499 = vld [vmem:[%s498] sm:$0xff]
  %500 = vst [vmem:[%s497] sm:$0xff] %v499
  %s501 = scalar_lea.vmem %s4, 488
  %s502 = scalar_lea.vmem %s1, 488
  %v503 = vld [vmem:[%s502] sm:$0xff]
  %504 = vst [vmem:[%s501] sm:$0xff] %v503
  %s505 = scalar_lea.vmem %s4, 496
  %s506 = scalar_lea.vmem %s1, 496
  %v507 = vld [vmem:[%s506] sm:$0xff]
  %508 = vst [vmem:[%s505] sm:$0xff] %v507
  %s509 = scalar_lea.vmem %s4, 504
  %s510 = scalar_lea.vmem %s1, 504
  %v511 = vld [vmem:[%s510] sm:$0xff]
  %512 = vst [vmem:[%s509] sm:$0xff] %v511

// kernel: freblock_adjust.1
$region0: #{freblock_adjust.1}
  #allocation0 [shape = 'u32[]', space=smem, size = 0x4, offset = 0x4, fixed_abs, tag = 'smem constant byte address 0x4 - core index']
  #allocation1 [shape = 'u32[144,128]{1,0:T(1,128)}', space=vmem, size = 0x12000, scoped, tag = 'internal scratch']
  %s0 = inlined_call_operand.vmem [shape: f32[16,128], index: 0, kind: input, shape index: {}]
  %s1 = inlined_call_operand.vmem [shape: f32[16,128], index: 1, kind: input, shape index: {}]
  %s2 = inlined_call_operand.vmem [shape: f32[16,128], index: 2, kind: input, shape index: {}]
  %s3 = inlined_call_operand.vmem [shape: f32[16,128], index: 3, kind: input, shape index: {}]
  %s4 = inlined_call_operand.vmem [shape: f32[16,128], index: 4, kind: input, shape index: {}]
  %s5 = inlined_call_operand.vmem [shape: f32[128,128], index: 5, kind: input, shape index: {}]
  %s6 = inlined_call_operand.vmem [shape: f32[1,128], index: 6, kind: input, shape index: {}]
  %s7 = inlined_call_operand.vmem [shape: f32[128,128], index: 7, kind: input, shape index: {}]
  %s8 = inlined_call_operand.vmem [shape: f32[1,128], index: 8, kind: input, shape index: {}]
  %s9 = inlined_call_operand.vmem [shape: f32[128,128], index: 9, kind: input, shape index: {}]
  %s10 = inlined_call_operand.vmem [shape: f32[1,128], index: 10, kind: input, shape index: {}]
  %s11 = inlined_call_operand.vmem [shape: f32[128,128], index: 11, kind: input, shape index: {}]
  %s12 = inlined_call_operand.vmem [shape: f32[1,128], index: 12, kind: input, shape index: {}]
  %s13 = inlined_call_operand.vmem [shape: f32[128,128], index: 13, kind: input, shape index: {}]
  %s14 = inlined_call_operand.vmem [shape: f32[128,128], index: 14, kind: input, shape index: {}]
  %s15 = inlined_call_operand.vmem [shape: f32[1,128], index: 15, kind: input, shape index: {}]
  %s16 = inlined_call_operand.vmem [shape: f32[128,128], index: 16, kind: input, shape index: {}]
  %s17 = inlined_call_operand.vmem [shape: f32[128,128], index: 17, kind: input, shape index: {}]
  %s18 = inlined_call_operand.vmem [shape: f32[1,128], index: 18, kind: input, shape index: {}]
  %s19 = inlined_call_operand.vmem [shape: f32[16,128], index: 19, kind: output, shape index: {0}]
  %s20 = inlined_call_operand.vmem [shape: f32[16,128], index: 20, kind: output, shape index: {1}]
  %21 = xla_tuple %s19, %s20
  %s22 = sld [smem:[#allocation0]]
  $region117: #{freblock_adjust.1} parent=0
    _
  %s24 = ssub.s32 1, %s22
  %s25 = scalar_select 0, %s24, %s22
  loop: start=0, step=1, limit=4
  $region2: #{freblock_adjust.1} parent=0 // loop_pre_header
    _
  $region3: #{freblock_adjust.1} parent=0 // loop_header
    %s27 = sphi 0, %s31
    %p28 = scmp.ge.s32.totalorder %s27, 4
    %s37 = sphi 0, %s39
    %s40 = sphi 0, %s37
    %s41 = sphi 0, %s40
    %s57 = sphi 0, %s41
    %s63 = sphi 0, %s65
    %s66 = sphi 0, %s63
    %s67 = sphi 0, %s66
    %s83 = sphi 0, %s67
    %s89 = sphi 0, %s91
    %s92 = sphi 0, %s89
    %s93 = sphi 0, %s92
    %s109 = sphi 0, %s93
    %s115 = sphi 0, %s117
    %s118 = sphi 0, %s115
    %s119 = sphi 0, %s118
    %s135 = sphi 0, %s119
    %s141 = sphi 0, %s143
    %s144 = sphi 0, %s141
    %s145 = sphi 0, %s144
    %s161 = sphi 0, %s145
    %s165 = sphi 0, %s165
    %s167 = sphi 0, %s165
    %s168 = sphi 0, %s167
    %s182 = sphi 0, %s168
    %s186 = sphi 0, %s186
    %s188 = sphi 0, %s186
    %s189 = sphi 0, %s188
    %s203 = sphi 0, %s189
    %s207 = sphi 0, %s207
    %s209 = sphi 0, %s207
    %s210 = sphi 0, %s209
    %s224 = sphi 0, %s210
    %s228 = sphi 0, %s228
    %s230 = sphi 0, %s228
    %s231 = sphi 0, %s230
    %s245 = sphi 0, %s231
    %s249 = sphi 0, %s249
    %s251 = sphi 0, %s249
    %s252 = sphi 0, %s251
    %s266 = sphi 0, %s252
    %s270 = sphi 0, %s270
    %s272 = sphi 0, %s270
    %s273 = sphi 0, %s272
    %s287 = sphi 0, %s273
    %s291 = sphi 0, %s291
    %s293 = sphi 0, %s291
    %s294 = sphi 0, %s293
    %s308 = sphi 0, %s294
    %s312 = sphi 0, %s312
    %s314 = sphi 0, %s312
    %s315 = sphi 0, %s314
    %s329 = sphi 0, %s315
    %s333 = sphi 0, %s333
    %s335 = sphi 0, %s333
    %s336 = sphi 0, %s335
    %s350 = sphi 0, %s336
    %s354 = sphi 0, %s354
    %s356 = sphi 0, %s354
    %s357 = sphi 0, %s356
    %s371 = sphi 0, %s357
    %s375 = sphi 0, %s375
    %s377 = sphi 0, %s375
    %s378 = sphi 0, %s377
    %s392 = sphi 0, %s378
    %s396 = sphi 0, %s396
    %s398 = sphi 0, %s396
    %s399 = sphi 0, %s398
    %s413 = sphi 0, %s399
    %s417 = sphi 0, %s417
    %s419 = sphi 0, %s417
    %s420 = sphi 0, %s419
    %s434 = sphi 0, %s420
    %s438 = sphi 0, %s438
    %s440 = sphi 0, %s438
    %s441 = sphi 0, %s440
    %s455 = sphi 0, %s441
    %s461 = sphi 0, %s463
    %s464 = sphi 0, %s461
    %s465 = sphi 0, %s464
    %s481 = sphi 0, %s465
    %s487 = sphi 0, %s489
    %s490 = sphi 0, %s487
    %s491 = sphi 0, %s490
    %s507 = sphi 0, %s491
  $region4: #{freblock_adjust.1} parent=0 // loop_header_branch
    %30 = sbr.rel (%p28) target = $region8
  $region5: #{freblock_adjust.1} parent=0 // loop_body
    %s32 = ssub.s32 %s27, 1
    %s33 = ssub.s32 %s27, 2
    %s34 = sadd.s32 %s27, 1
    %s35 = ssub.s32 %s27, %s34
    %p36 = scmp.eq.s32.totalorder %s35, 0
    %s38 = sadd.s32 %s37, 1
    %s39 = scalar_select %p36, %s37, %s38
    %p42 = pneg %p36
    %p43 = scmp.eq.s32.totalorder %s27, 1
    %p44 = por %p42, %p43
    %p45 = scmp.ne.s32.totalorder %s37, %s40
    %p46 = scmp.eq.s32.totalorder %s27, 0
    %p47 = por %p45, %p46
    %p48 = scmp.ne.s32.totalorder %s37, %s40
    %p49 = scmp.eq.s32.totalorder %s32, 1
    %p50 = por %p48, %p49
    %p51 = scmp.ne.s32.totalorder %s40, %s41
    %p52 = scmp.eq.s32.totalorder %s32, 0
    %p53 = por %p51, %p52
    %p54 = scmp.ne.s32.totalorder %s40, %s41
    %p55 = scmp.eq.s32.totalorder %s33, 1
    %p56 = por %p54, %p55
    %p58 = scmp.ne.s32.totalorder %s41, %s57
    %p59 = scmp.eq.s32.totalorder %s33, 0
    %p60 = por %p58, %p59
    %s61 = ssub.s32 %s27, %s34
    %p62 = scmp.eq.s32.totalorder %s61, 0
    %s64 = sadd.s32 %s63, 1
    %s65 = scalar_select %p62, %s63, %s64
    %p68 = pneg %p62
    %p69 = scmp.eq.s32.totalorder %s27, 1
    %p70 = por %p68, %p69
    %p71 = scmp.ne.s32.totalorder %s63, %s66
    %p72 = scmp.eq.s32.totalorder %s27, 0
    %p73 = por %p71, %p72
    %p74 = scmp.ne.s32.totalorder %s63, %s66
    %p75 = scmp.eq.s32.totalorder %s32, 1
    %p76 = por %p74, %p75
    %p77 = scmp.ne.s32.totalorder %s66, %s67
    %p78 = scmp.eq.s32.totalorder %s32, 0
    %p79 = por %p77, %p78
    %p80 = scmp.ne.s32.totalorder %s66, %s67
    %p81 = scmp.eq.s32.totalorder %s33, 1
    %p82 = por %p80, %p81
    %p84 = scmp.ne.s32.totalorder %s67, %s83
    %p85 = scmp.eq.s32.totalorder %s33, 0
    %p86 = por %p84, %p85
    %s87 = ssub.s32 %s27, %s34
    %p88 = scmp.eq.s32.totalorder %s87, 0
    %s90 = sadd.s32 %s89, 1
    %s91 = scalar_select %p88, %s89, %s90
    %p94 = pneg %p88
    %p95 = scmp.eq.s32.totalorder %s27, 1
    %p96 = por %p94, %p95
    %p97 = scmp.ne.s32.totalorder %s89, %s92
    %p98 = scmp.eq.s32.totalorder %s27, 0
    %p99 = por %p97, %p98
    %p100 = scmp.ne.s32.totalorder %s89, %s92
    %p101 = scmp.eq.s32.totalorder %s32, 1
    %p102 = por %p100, %p101
    %p103 = scmp.ne.s32.totalorder %s92, %s93
    %p104 = scmp.eq.s32.totalorder %s32, 0
    %p105 = por %p103, %p104
    %p106 = scmp.ne.s32.totalorder %s92, %s93
    %p107 = scmp.eq.s32.totalorder %s33, 1
    %p108 = por %p106, %p107
    %p110 = scmp.ne.s32.totalorder %s93, %s109
    %p111 = scmp.eq.s32.totalorder %s33, 0
    %p112 = por %p110, %p111
    %s113 = ssub.s32 %s27, %s34
    %p114 = scmp.eq.s32.totalorder %s113, 0
    %s116 = sadd.s32 %s115, 1
    %s117 = scalar_select %p114, %s115, %s116
    %p120 = pneg %p114
    %p121 = scmp.eq.s32.totalorder %s27, 1
    %p122 = por %p120, %p121
    %p123 = scmp.ne.s32.totalorder %s115, %s118
    %p124 = scmp.eq.s32.totalorder %s27, 0
    %p125 = por %p123, %p124
    %p126 = scmp.ne.s32.totalorder %s115, %s118
    %p127 = scmp.eq.s32.totalorder %s32, 1
    %p128 = por %p126, %p127
    %p129 = scmp.ne.s32.totalorder %s118, %s119
    %p130 = scmp.eq.s32.totalorder %s32, 0
    %p131 = por %p129, %p130
    %p132 = scmp.ne.s32.totalorder %s118, %s119
    %p133 = scmp.eq.s32.totalorder %s33, 1
    %p134 = por %p132, %p133
    %p136 = scmp.ne.s32.totalorder %s119, %s135
    %p137 = scmp.eq.s32.totalorder %s33, 0
    %p138 = por %p136, %p137
    %s139 = ssub.s32 %s27, %s34
    %p140 = scmp.eq.s32.totalorder %s139, 0
    %s142 = sadd.s32 %s141, 1
    %s143 = scalar_select %p140, %s141, %s142
    %p146 = pneg %p140
    %p147 = scmp.eq.s32.totalorder %s27, 1
    %p148 = por %p146, %p147
    %p149 = scmp.ne.s32.totalorder %s141, %s144
    %p150 = scmp.eq.s32.totalorder %s27, 0
    %p151 = por %p149, %p150
    %p152 = scmp.ne.s32.totalorder %s141, %s144
    %p153 = scmp.eq.s32.totalorder %s32, 1
    %p154 = por %p152, %p153
    %p155 = scmp.ne.s32.totalorder %s144, %s145
    %p156 = scmp.eq.s32.totalorder %s32, 0
    %p157 = por %p155, %p156
    %p158 = scmp.ne.s32.totalorder %s144, %s145
    %p159 = scmp.eq.s32.totalorder %s33, 1
    %p160 = por %p158, %p159
    %p162 = scmp.ne.s32.totalorder %s145, %s161
    %p163 = scmp.eq.s32.totalorder %s33, 0
    %p164 = por %p162, %p163
    %s166 = sadd.s32 %s165, 1
    %p169 = scmp.eq.s32.totalorder %s27, 1
    %p170 = scmp.ne.s32.totalorder %s165, %s167
    %p171 = scmp.eq.s32.totalorder %s27, 0
    %p172 = por %p170, %p171
    %p173 = scmp.ne.s32.totalorder %s165, %s167
    %p174 = scmp.eq.s32.totalorder %s32, 1
    %p175 = por %p173, %p174
    %p176 = scmp.ne.s32.totalorder %s167, %s168
    %p177 = scmp.eq.s32.totalorder %s32, 0
    %p178 = por %p176, %p177
    %p179 = scmp.ne.s32.totalorder %s167, %s168
    %p180 = scmp.eq.s32.totalorder %s33, 1
    %p181 = por %p179, %p180
    %p183 = scmp.ne.s32.totalorder %s168, %s182
    %p184 = scmp.eq.s32.totalorder %s33, 0
    %p185 = por %p183, %p184
    %s187 = sadd.s32 %s186, 1
    %p190 = scmp.eq.s32.totalorder %s27, 1
    %p191 = scmp.ne.s32.totalorder %s186, %s188
    %p192 = scmp.eq.s32.totalorder %s27, 0
    %p193 = por %p191, %p192
    %p194 = scmp.ne.s32.totalorder %s186, %s188
    %p195 = scmp.eq.s32.totalorder %s32, 1
    %p196 = por %p194, %p195
    %p197 = scmp.ne.s32.totalorder %s188, %s189
    %p198 = scmp.eq.s32.totalorder %s32, 0
    %p199 = por %p197, %p198
    %p200 = scmp.ne.s32.totalorder %s188, %s189
    %p201 = scmp.eq.s32.totalorder %s33, 1
    %p202 = por %p200, %p201
    %p204 = scmp.ne.s32.totalorder %s189, %s203
    %p205 = scmp.eq.s32.totalorder %s33, 0
    %p206 = por %p204, %p205
    %s208 = sadd.s32 %s207, 1
    %p211 = scmp.eq.s32.totalorder %s27, 1
    %p212 = scmp.ne.s32.totalorder %s207, %s209
    %p213 = scmp.eq.s32.totalorder %s27, 0
    %p214 = por %p212, %p213
    %p215 = scmp.ne.s32.totalorder %s207, %s209
    %p216 = scmp.eq.s32.totalorder %s32, 1
    %p217 = por %p215, %p216
    %p218 = scmp.ne.s32.totalorder %s209, %s210
    %p219 = scmp.eq.s32.totalorder %s32, 0
    %p220 = por %p218, %p219
    %p221 = scmp.ne.s32.totalorder %s209, %s210
    %p222 = scmp.eq.s32.totalorder %s33, 1
    %p223 = por %p221, %p222
    %p225 = scmp.ne.s32.totalorder %s210, %s224
    %p226 = scmp.eq.s32.totalorder %s33, 0
    %p227 = por %p225, %p226
    %s229 = sadd.s32 %s228, 1
    %p232 = scmp.eq.s32.totalorder %s27, 1
    %p233 = scmp.ne.s32.totalorder %s228, %s230
    %p234 = scmp.eq.s32.totalorder %s27, 0
    %p235 = por %p233, %p234
    %p236 = scmp.ne.s32.totalorder %s228, %s230
    %p237 = scmp.eq.s32.totalorder %s32, 1
    %p238 = por %p236, %p237
    %p239 = scmp.ne.s32.totalorder %s230, %s231
    %p240 = scmp.eq.s32.totalorder %s32, 0
    %p241 = por %p239, %p240
    %p242 = scmp.ne.s32.totalorder %s230, %s231
    %p243 = scmp.eq.s32.totalorder %s33, 1
    %p244 = por %p242, %p243
    %p246 = scmp.ne.s32.totalorder %s231, %s245
    %p247 = scmp.eq.s32.totalorder %s33, 0
    %p248 = por %p246, %p247
    %s250 = sadd.s32 %s249, 1
    %p253 = scmp.eq.s32.totalorder %s27, 1
    %p254 = scmp.ne.s32.totalorder %s249, %s251
    %p255 = scmp.eq.s32.totalorder %s27, 0
    %p256 = por %p254, %p255
    %p257 = scmp.ne.s32.totalorder %s249, %s251
    %p258 = scmp.eq.s32.totalorder %s32, 1
    %p259 = por %p257, %p258
    %p260 = scmp.ne.s32.totalorder %s251, %s252
    %p261 = scmp.eq.s32.totalorder %s32, 0
    %p262 = por %p260, %p261
    %p263 = scmp.ne.s32.totalorder %s251, %s252
    %p264 = scmp.eq.s32.totalorder %s33, 1
    %p265 = por %p263, %p264
    %p267 = scmp.ne.s32.totalorder %s252, %s266
    %p268 = scmp.eq.s32.totalorder %s33, 0
    %p269 = por %p267, %p268
    %s271 = sadd.s32 %s270, 1
    %p274 = scmp.eq.s32.totalorder %s27, 1
    %p275 = scmp.ne.s32.totalorder %s270, %s272
    %p276 = scmp.eq.s32.totalorder %s27, 0
    %p277 = por %p275, %p276
    %p278 = scmp.ne.s32.totalorder %s270, %s272
    %p279 = scmp.eq.s32.totalorder %s32, 1
    %p280 = por %p278, %p279
    %p281 = scmp.ne.s32.totalorder %s272, %s273
    %p282 = scmp.eq.s32.totalorder %s32, 0
    %p283 = por %p281, %p282
    %p284 = scmp.ne.s32.totalorder %s272, %s273
    %p285 = scmp.eq.s32.totalorder %s33, 1
    %p286 = por %p284, %p285
    %p288 = scmp.ne.s32.totalorder %s273, %s287
    %p289 = scmp.eq.s32.totalorder %s33, 0
    %p290 = por %p288, %p289
    %s292 = sadd.s32 %s291, 1
    %p295 = scmp.eq.s32.totalorder %s27, 1
    %p296 = scmp.ne.s32.totalorder %s291, %s293
    %p297 = scmp.eq.s32.totalorder %s27, 0
    %p298 = por %p296, %p297
    %p299 = scmp.ne.s32.totalorder %s291, %s293
    %p300 = scmp.eq.s32.totalorder %s32, 1
    %p301 = por %p299, %p300
    %p302 = scmp.ne.s32.totalorder %s293, %s294
    %p303 = scmp.eq.s32.totalorder %s32, 0
    %p304 = por %p302, %p303
    %p305 = scmp.ne.s32.totalorder %s293, %s294
    %p306 = scmp.eq.s32.totalorder %s33, 1
    %p307 = por %p305, %p306
    %p309 = scmp.ne.s32.totalorder %s294, %s308
    %p310 = scmp.eq.s32.totalorder %s33, 0
    %p311 = por %p309, %p310
    %s313 = sadd.s32 %s312, 1
    %p316 = scmp.eq.s32.totalorder %s27, 1
    %p317 = scmp.ne.s32.totalorder %s312, %s314
    %p318 = scmp.eq.s32.totalorder %s27, 0
    %p319 = por %p317, %p318
    %p320 = scmp.ne.s32.totalorder %s312, %s314
    %p321 = scmp.eq.s32.totalorder %s32, 1
    %p322 = por %p320, %p321
    %p323 = scmp.ne.s32.totalorder %s314, %s315
    %p324 = scmp.eq.s32.totalorder %s32, 0
    %p325 = por %p323, %p324
    %p326 = scmp.ne.s32.totalorder %s314, %s315
    %p327 = scmp.eq.s32.totalorder %s33, 1
    %p328 = por %p326, %p327
    %p330 = scmp.ne.s32.totalorder %s315, %s329
    %p331 = scmp.eq.s32.totalorder %s33, 0
    %p332 = por %p330, %p331
    %s334 = sadd.s32 %s333, 1
    %p337 = scmp.eq.s32.totalorder %s27, 1
    %p338 = scmp.ne.s32.totalorder %s333, %s335
    %p339 = scmp.eq.s32.totalorder %s27, 0
    %p340 = por %p338, %p339
    %p341 = scmp.ne.s32.totalorder %s333, %s335
    %p342 = scmp.eq.s32.totalorder %s32, 1
    %p343 = por %p341, %p342
    %p344 = scmp.ne.s32.totalorder %s335, %s336
    %p345 = scmp.eq.s32.totalorder %s32, 0
    %p346 = por %p344, %p345
    %p347 = scmp.ne.s32.totalorder %s335, %s336
    %p348 = scmp.eq.s32.totalorder %s33, 1
    %p349 = por %p347, %p348
    %p351 = scmp.ne.s32.totalorder %s336, %s350
    %p352 = scmp.eq.s32.totalorder %s33, 0
    %p353 = por %p351, %p352
    %s355 = sadd.s32 %s354, 1
    %p358 = scmp.eq.s32.totalorder %s27, 1
    %p359 = scmp.ne.s32.totalorder %s354, %s356
    %p360 = scmp.eq.s32.totalorder %s27, 0
    %p361 = por %p359, %p360
    %p362 = scmp.ne.s32.totalorder %s354, %s356
    %p363 = scmp.eq.s32.totalorder %s32, 1
    %p364 = por %p362, %p363
    %p365 = scmp.ne.s32.totalorder %s356, %s357
    %p366 = scmp.eq.s32.totalorder %s32, 0
    %p367 = por %p365, %p366
    %p368 = scmp.ne.s32.totalorder %s356, %s357
    %p369 = scmp.eq.s32.totalorder %s33, 1
    %p370 = por %p368, %p369
    %p372 = scmp.ne.s32.totalorder %s357, %s371
    %p373 = scmp.eq.s32.totalorder %s33, 0
    %p374 = por %p372, %p373
    %s376 = sadd.s32 %s375, 1
    %p379 = scmp.eq.s32.totalorder %s27, 1
    %p380 = scmp.ne.s32.totalorder %s375, %s377
    %p381 = scmp.eq.s32.totalorder %s27, 0
    %p382 = por %p380, %p381
    %p383 = scmp.ne.s32.totalorder %s375, %s377
    %p384 = scmp.eq.s32.totalorder %s32, 1
    %p385 = por %p383, %p384
    %p386 = scmp.ne.s32.totalorder %s377, %s378
    %p387 = scmp.eq.s32.totalorder %s32, 0
    %p388 = por %p386, %p387
    %p389 = scmp.ne.s32.totalorder %s377, %s378
    %p390 = scmp.eq.s32.totalorder %s33, 1
    %p391 = por %p389, %p390
    %p393 = scmp.ne.s32.totalorder %s378, %s392
    %p394 = scmp.eq.s32.totalorder %s33, 0
    %p395 = por %p393, %p394
    %s397 = sadd.s32 %s396, 1
    %p400 = scmp.eq.s32.totalorder %s27, 1
    %p401 = scmp.ne.s32.totalorder %s396, %s398
    %p402 = scmp.eq.s32.totalorder %s27, 0
    %p403 = por %p401, %p402
    %p404 = scmp.ne.s32.totalorder %s396, %s398
    %p405 = scmp.eq.s32.totalorder %s32, 1
    %p406 = por %p404, %p405
    %p407 = scmp.ne.s32.totalorder %s398, %s399
    %p408 = scmp.eq.s32.totalorder %s32, 0
    %p409 = por %p407, %p408
    %p410 = scmp.ne.s32.totalorder %s398, %s399
    %p411 = scmp.eq.s32.totalorder %s33, 1
    %p412 = por %p410, %p411
    %p414 = scmp.ne.s32.totalorder %s399, %s413
    %p415 = scmp.eq.s32.totalorder %s33, 0
    %p416 = por %p414, %p415
    %s418 = sadd.s32 %s417, 1
    %p421 = scmp.eq.s32.totalorder %s27, 1
    %p422 = scmp.ne.s32.totalorder %s417, %s419
    %p423 = scmp.eq.s32.totalorder %s27, 0
    %p424 = por %p422, %p423
    %p425 = scmp.ne.s32.totalorder %s417, %s419
    %p426 = scmp.eq.s32.totalorder %s32, 1
    %p427 = por %p425, %p426
    %p428 = scmp.ne.s32.totalorder %s419, %s420
    %p429 = scmp.eq.s32.totalorder %s32, 0
    %p430 = por %p428, %p429
    %p431 = scmp.ne.s32.totalorder %s419, %s420
    %p432 = scmp.eq.s32.totalorder %s33, 1
    %p433 = por %p431, %p432
    %p435 = scmp.ne.s32.totalorder %s420, %s434
    %p436 = scmp.eq.s32.totalorder %s33, 0
    %p437 = por %p435, %p436
    %s439 = sadd.s32 %s438, 1
    %p442 = scmp.eq.s32.totalorder %s27, 1
    %p443 = scmp.ne.s32.totalorder %s438, %s440
    %p444 = scmp.eq.s32.totalorder %s27, 0
    %p445 = por %p443, %p444
    %p446 = scmp.ne.s32.totalorder %s438, %s440
    %p447 = scmp.eq.s32.totalorder %s32, 1
    %p448 = por %p446, %p447
    %p449 = scmp.ne.s32.totalorder %s440, %s441
    %p450 = scmp.eq.s32.totalorder %s32, 0
    %p451 = por %p449, %p450
    %p452 = scmp.ne.s32.totalorder %s440, %s441
    %p453 = scmp.eq.s32.totalorder %s33, 1
    %p454 = por %p452, %p453
    %p456 = scmp.ne.s32.totalorder %s441, %s455
    %p457 = scmp.eq.s32.totalorder %s33, 0
    %p458 = por %p456, %p457
    %s459 = ssub.s32 %s27, %s34
    %p460 = scmp.eq.s32.totalorder %s459, 0
    %s462 = sadd.s32 %s461, 1
    %s463 = scalar_select %p460, %s461, %s462
    %p466 = pneg %p460
    %p467 = scmp.eq.s32.totalorder %s27, 1
    %p468 = por %p466, %p467
    %p469 = scmp.ne.s32.totalorder %s461, %s464
    %p470 = scmp.eq.s32.totalorder %s27, 0
    %p471 = por %p469, %p470
    %p472 = scmp.ne.s32.totalorder %s461, %s464
    %p473 = scmp.eq.s32.totalorder %s32, 1
    %p474 = por %p472, %p473
    %p475 = scmp.ne.s32.totalorder %s464, %s465
    %p476 = scmp.eq.s32.totalorder %s32, 0
    %p477 = por %p475, %p476
    %p478 = scmp.ne.s32.totalorder %s464, %s465
    %p479 = scmp.eq.s32.totalorder %s33, 1
    %p480 = por %p478, %p479
    %p482 = scmp.ne.s32.totalorder %s465, %s481
    %p483 = scmp.eq.s32.totalorder %s33, 0
    %p484 = por %p482, %p483
    %s485 = ssub.s32 %s27, %s34
    %p486 = scmp.eq.s32.totalorder %s485, 0
    %s488 = sadd.s32 %s487, 1
    %s489 = scalar_select %p486, %s487, %s488
    %p492 = pneg %p486
    %p493 = scmp.eq.s32.totalorder %s27, 1
    %p494 = por %p492, %p493
    %p495 = scmp.ne.s32.totalorder %s487, %s490
    %p496 = scmp.eq.s32.totalorder %s27, 0
    %p497 = por %p495, %p496
    %p498 = scmp.ne.s32.totalorder %s487, %s490
    %p499 = scmp.eq.s32.totalorder %s32, 1
    %p500 = por %p498, %p499
    %p501 = scmp.ne.s32.totalorder %s490, %s491
    %p502 = scmp.eq.s32.totalorder %s32, 0
    %p503 = por %p501, %p502
    %p504 = scmp.ne.s32.totalorder %s490, %s491
    %p505 = scmp.eq.s32.totalorder %s33, 1
    %p506 = por %p504, %p505
    %p508 = scmp.ne.s32.totalorder %s491, %s507
    %p509 = scmp.eq.s32.totalorder %s33, 0
    %p510 = por %p508, %p509
    %p511 = scmp.le.s32.totalorder 1, %s27
    %p512 = scmp.lt.s32.totalorder %s27, 3
    %p513 = pnand %p511, %p512
    %p514 = pneg %p513
    // Predicated region
    $region9: #{freblock_adjust.1} parent=5 // pred_check
      _
    $region10: #{freblock_adjust.1} parent=5 // pred_check_branch
      %516 = sbr.rel (%p513) target = $region12
    $region11: #{freblock_adjust.1} parent=5 // pred_region
      %s517 = ssub.s32 %s27, 1
      // Predicated region
      $region13: #{freblock_adjust.1} parent=11 // pred_check
        %p518 = pneg %p178
      $region14: #{freblock_adjust.1} parent=11 // pred_check_branch
        %520 = sbr.rel (%p518) target = $region16
      $region15: #{freblock_adjust.1} parent=11 // pred_region
        _
      $region16: #{freblock_adjust.1} parent=11 // pred_fallthru
        _
      // Predicated region
      $region17: #{freblock_adjust.1} parent=11 // pred_check
        %p521 = pneg %p199
      $region18: #{freblock_adjust.1} parent=11 // pred_check_branch
        %523 = sbr.rel (%p521) target = $region20
      $region19: #{freblock_adjust.1} parent=11 // pred_region
        _
      $region20: #{freblock_adjust.1} parent=11 // pred_fallthru
        _
      // Predicated region
      $region21: #{freblock_adjust.1} parent=11 // pred_check
        %p524 = pneg %p220
      $region22: #{freblock_adjust.1} parent=11 // pred_check_branch
        %526 = sbr.rel (%p524) target = $region24
      $region23: #{freblock_adjust.1} parent=11 // pred_region
        _
      $region24: #{freblock_adjust.1} parent=11 // pred_fallthru
        _
      // Predicated region
      $region25: #{freblock_adjust.1} parent=11 // pred_check
        %p527 = pneg %p241
      $region26: #{freblock_adjust.1} parent=11 // pred_check_branch
        %529 = sbr.rel (%p527) target = $region28
      $region27: #{freblock_adjust.1} parent=11 // pred_region
        _
      $region28: #{freblock_adjust.1} parent=11 // pred_fallthru
        _
      // Predicated region
      $region29: #{freblock_adjust.1} parent=11 // pred_check
        %p530 = pneg %p262
      $region30: #{freblock_adjust.1} parent=11 // pred_check_branch
        %532 = sbr.rel (%p530) target = $region32
      $region31: #{freblock_adjust.1} parent=11 // pred_region
        _
      $region32: #{freblock_adjust.1} parent=11 // pred_fallthru
        _
      // Predicated region
      $region33: #{freblock_adjust.1} parent=11 // pred_check
        %p533 = pneg %p283
      $region34: #{freblock_adjust.1} parent=11 // pred_check_branch
        %535 = sbr.rel (%p533) target = $region36
      $region35: #{freblock_adjust.1} parent=11 // pred_region
        _
      $region36: #{freblock_adjust.1} parent=11 // pred_fallthru
        _
      // Predicated region
      $region37: #{freblock_adjust.1} parent=11 // pred_check
        %p536 = pneg %p304
      $region38: #{freblock_adjust.1} parent=11 // pred_check_branch
        %538 = sbr.rel (%p536) target = $region40
      $region39: #{freblock_adjust.1} parent=11 // pred_region
        _
      $region40: #{freblock_adjust.1} parent=11 // pred_fallthru
        _
      // Predicated region
      $region41: #{freblock_adjust.1} parent=11 // pred_check
        %p539 = pneg %p325
      $region42: #{freblock_adjust.1} parent=11 // pred_check_branch
        %541 = sbr.rel (%p539) target = $region44
      $region43: #{freblock_adjust.1} parent=11 // pred_region
        _
      $region44: #{freblock_adjust.1} parent=11 // pred_fallthru
        _
      // Predicated region
      $region45: #{freblock_adjust.1} parent=11 // pred_check
        %p542 = pneg %p346
      $region46: #{freblock_adjust.1} parent=11 // pred_check_branch
        %544 = sbr.rel (%p542) target = $region48
      $region47: #{freblock_adjust.1} parent=11 // pred_region
        _
      $region48: #{freblock_adjust.1} parent=11 // pred_fallthru
        _
      // Predicated region
      $region49: #{freblock_adjust.1} parent=11 // pred_check
        %p545 = pneg %p367
      $region50: #{freblock_adjust.1} parent=11 // pred_check_branch
        %547 = sbr.rel (%p545) target = $region52
      $region51: #{freblock_adjust.1} parent=11 // pred_region
        _
      $region52: #{freblock_adjust.1} parent=11 // pred_fallthru
        _
      // Predicated region
      $region53: #{freblock_adjust.1} parent=11 // pred_check
        %p548 = pneg %p388
      $region54: #{freblock_adjust.1} parent=11 // pred_check_branch
        %550 = sbr.rel (%p548) target = $region56
      $region55: #{freblock_adjust.1} parent=11 // pred_region
        _
      $region56: #{freblock_adjust.1} parent=11 // pred_fallthru
        _
      // Predicated region
      $region57: #{freblock_adjust.1} parent=11 // pred_check
        %p551 = pneg %p409
      $region58: #{freblock_adjust.1} parent=11 // pred_check_branch
        %553 = sbr.rel (%p551) target = $region60
      $region59: #{freblock_adjust.1} parent=11 // pred_region
        _
      $region60: #{freblock_adjust.1} parent=11 // pred_fallthru
        _
      // Predicated region
      $region61: #{freblock_adjust.1} parent=11 // pred_check
        %p554 = pneg %p430
      $region62: #{freblock_adjust.1} parent=11 // pred_check_branch
        %556 = sbr.rel (%p554) target = $region64
      $region63: #{freblock_adjust.1} parent=11 // pred_region
        _
      $region64: #{freblock_adjust.1} parent=11 // pred_fallthru
        _
      // Predicated region
      $region65: #{freblock_adjust.1} parent=11 // pred_check
        %p557 = pneg %p451
      $region66: #{freblock_adjust.1} parent=11 // pred_check_branch
        %559 = sbr.rel (%p557) target = $region68
      $region67: #{freblock_adjust.1} parent=11 // pred_region
        _
      $region68: #{freblock_adjust.1} parent=11 // pred_fallthru
        _
    $region12: #{freblock_adjust.1} parent=5 // pred_fallthru
      _
    %p560 = scmp.lt.s32.totalorder %s27, 2
    // Predicated region
    $region69: #{freblock_adjust.1} parent=5 // pred_check
      %p561 = pneg %p560
    $region70: #{freblock_adjust.1} parent=5 // pred_check_branch
      %563 = sbr.rel (%p561) target = $region72
    $region71: #{freblock_adjust.1} parent=5 // pred_region
      // Predicated region
      $region73: #{freblock_adjust.1} parent=71 // pred_check
        %p564 = pneg %p47
      $region74: #{freblock_adjust.1} parent=71 // pred_check_branch
        %566 = sbr.rel (%p564) target = $region76
      $region75: #{freblock_adjust.1} parent=71 // pred_region
        %p567 = scmp.lt.s32.totalorder %s27, 1
        %s568 = scalar_select %p567, %s27, 1
        %s569 = smul.addr %s568, 8
        %s570 = scalar_lea.vmem %s0, %s569
      $region76: #{freblock_adjust.1} parent=71 // pred_fallthru
        _
      // Predicated region
      $region77: #{freblock_adjust.1} parent=71 // pred_check
        %p571 = pneg %p73
      $region78: #{freblock_adjust.1} parent=71 // pred_check_branch
        %573 = sbr.rel (%p571) target = $region80
      $region79: #{freblock_adjust.1} parent=71 // pred_region
        %p574 = scmp.lt.s32.totalorder %s27, 1
        %s575 = scalar_select %p574, %s27, 1
        %s576 = smul.addr %s575, 8
        %s577 = scalar_lea.vmem %s1, %s576
      $region80: #{freblock_adjust.1} parent=71 // pred_fallthru
        _
      // Predicated region
      $region81: #{freblock_adjust.1} parent=71 // pred_check
        %p578 = pneg %p99
      $region82: #{freblock_adjust.1} parent=71 // pred_check_branch
        %580 = sbr.rel (%p578) target = $region84
      $region83: #{freblock_adjust.1} parent=71 // pred_region
        %p581 = scmp.lt.s32.totalorder %s27, 1
        %s582 = scalar_select %p581, %s27, 1
        %s583 = smul.addr %s582, 8
        %s584 = scalar_lea.vmem %s2, %s583
      $region84: #{freblock_adjust.1} parent=71 // pred_fallthru
        _
      // Predicated region
      $region85: #{freblock_adjust.1} parent=71 // pred_check
        %p585 = pneg %p125
      $region86: #{freblock_adjust.1} parent=71 // pred_check_branch
        %587 = sbr.rel (%p585) target = $region88
      $region87: #{freblock_adjust.1} parent=71 // pred_region
        %p588 = scmp.lt.s32.totalorder %s27, 1
        %s589 = scalar_select %p588, %s27, 1
        %s590 = smul.addr %s589, 8
        %s591 = scalar_lea.vmem %s3, %s590
      $region88: #{freblock_adjust.1} parent=71 // pred_fallthru
        _
      // Predicated region
      $region89: #{freblock_adjust.1} parent=71 // pred_check
        %p592 = pneg %p151
      $region90: #{freblock_adjust.1} parent=71 // pred_check_branch
        %594 = sbr.rel (%p592) target = $region92
      $region91: #{freblock_adjust.1} parent=71 // pred_region
        %p595 = scmp.lt.s32.totalorder %s27, 1
        %s596 = scalar_select %p595, %s27, 1
        %s597 = smul.addr %s596, 8
        %s598 = scalar_lea.vmem %s4, %s597
      $region92: #{freblock_adjust.1} parent=71 // pred_fallthru
        _
    $region72: #{freblock_adjust.1} parent=5 // pred_fallthru
      _
    %p599 = scmp.le.s32.totalorder 1, %s27
    %p600 = scmp.lt.s32.totalorder %s27, 3
    %p601 = pnand %p599, %p600
    %p602 = pneg %p601
    // Predicated region
    $region93: #{freblock_adjust.1} parent=5 // pred_check
      _
    $region94: #{freblock_adjust.1} parent=5 // pred_check_branch
      %604 = sbr.rel (%p601) target = $region96
    $region95: #{freblock_adjust.1} parent=5 // pred_region
      %s605 = ssub.s32 %s27, 1
      %p606 = scmp.lt.s32.totalorder %s32, 1
      %s607 = scalar_select %p606, %s32, 1
      %s608 = smul.addr %s607, 8
      %s609 = scalar_lea.vmem %s0, %s608
      %p610 = pneg %p53
      %p611 = pneg %p50
      %p612 = scmp.lt.s32.totalorder %s32, 1
      %s613 = scalar_select %p612, %s32, 1
      %s614 = smul.addr %s613, 8
      %s615 = scalar_lea.vmem %s1, %s614
      %p616 = pneg %p79
      %p617 = pneg %p76
      %p618 = scmp.lt.s32.totalorder %s32, 1
      %s619 = scalar_select %p618, %s32, 1
      %s620 = smul.addr %s619, 8
      %s621 = scalar_lea.vmem %s2, %s620
      %p622 = pneg %p105
      %p623 = pneg %p102
      %p624 = scmp.lt.s32.totalorder %s32, 1
      %s625 = scalar_select %p624, %s32, 1
      %s626 = smul.addr %s625, 8
      %s627 = scalar_lea.vmem %s3, %s626
      %p628 = pneg %p131
      %p629 = pneg %p128
      %p630 = scmp.lt.s32.totalorder %s32, 1
      %s631 = scalar_select %p630, %s32, 1
      %s632 = smul.addr %s631, 8
      %s633 = scalar_lea.vmem %s4, %s632
      %p634 = pneg %p157
      %p635 = pneg %p154
      %p636 = pneg %p178
      %p637 = pneg %p175
      %p638 = pneg %p199
      %p639 = pneg %p196
      %p640 = pneg %p220
      %p641 = pneg %p217
      %p642 = pneg %p241
      %p643 = pneg %p238
      %p644 = pneg %p262
      %p645 = pneg %p259
      %p646 = pneg %p283
      %p647 = pneg %p280
      %p648 = pneg %p304
      %p649 = pneg %p301
      %p650 = pneg %p325
      %p651 = pneg %p322
      %p652 = pneg %p346
      %p653 = pneg %p343
      %p654 = pneg %p367
      %p655 = pneg %p364
      %p656 = pneg %p388
      %p657 = pneg %p385
      %p658 = pneg %p409
      %p659 = pneg %p406
      %p660 = pneg %p430
      %p661 = pneg %p427
      %p662 = pneg %p451
      %p663 = pneg %p448
      %p664 = pneg %p477
      %p665 = pneg %p474
      %p666 = scmp.lt.s32.totalorder %s32, 1
      %s667 = scalar_select %p666, %s32, 1
      %s668 = smul.addr %s667, 8
      %s669 = scalar_lea.vmem %s19, %s668
      %p670 = pneg %p503
      %p671 = pneg %p500
      %p672 = scmp.lt.s32.totalorder %s32, 1
      %s673 = scalar_select %p672, %s32, 1
      %s674 = smul.addr %s673, 8
      %s675 = scalar_lea.vmem %s20, %s674
      %p676 = scmp.lt.s32.totalorder %s32, 1
      %s677 = scalar_select %p676, %s32, 1
      %s678 = smul.addr %s677, 8
      %s679 = scalar_lea.vmem %s0, %s678
      %p680 = scmp.lt.s32.totalorder %s32, 1
      %s681 = scalar_select %p680, %s32, 1
      %s682 = smul.addr %s681, 8
      %s683 = scalar_lea.vmem %s1, %s682
      %p684 = scmp.lt.s32.totalorder %s32, 1
      %s685 = scalar_select %p684, %s32, 1
      %s686 = smul.addr %s685, 8
      %s687 = scalar_lea.vmem %s2, %s686
      %p688 = scmp.lt.s32.totalorder %s32, 1
      %s689 = scalar_select %p688, %s32, 1
      %s690 = smul.addr %s689, 8
      %s691 = scalar_lea.vmem %s3, %s690
      %p692 = scmp.lt.s32.totalorder %s32, 1
      %s693 = scalar_select %p692, %s32, 1
      %s694 = smul.addr %s693, 8
      %s695 = scalar_lea.vmem %s4, %s694
      %p696 = scmp.lt.s32.totalorder %s32, 1
      %s697 = scalar_select %p696, %s32, 1
      %s698 = smul.addr %s697, 8
      %s699 = scalar_lea.vmem %s19, %s698
      %p700 = scmp.lt.s32.totalorder %s32, 1
      %s701 = scalar_select %p700, %s32, 1
      %s702 = smul.addr %s701, 8
      %s703 = scalar_lea.vmem %s20, %s702
      %v704 = vld [vmem:[%s679] sm:$0xff]
      %v705 = vld [vmem:[%s5] sm:$0xff]
      %v706 = vld [vmem:[%s5 + $0x8] sm:$0xff]
      %v707 = vld [vmem:[%s5 + $0x10] sm:$0xff]
      %v708 = vld [vmem:[%s5 + $0x18] sm:$0xff]
      %v709 = vld [vmem:[%s5 + $0x20] sm:$0xff]
      %v710 = vld [vmem:[%s5 + $0x28] sm:$0xff]
      %v711 = vld [vmem:[%s5 + $0x30] sm:$0xff]
      %v712 = vld [vmem:[%s5 + $0x38] sm:$0xff]
      %v713 = vld [vmem:[%s5 + $0x40] sm:$0xff]
      %v714 = vld [vmem:[%s5 + $0x48] sm:$0xff]
      %v715 = vld [vmem:[%s5 + $0x50] sm:$0xff]
      %v716 = vld [vmem:[%s5 + $0x58] sm:$0xff]
      %v717 = vld [vmem:[%s5 + $0x60] sm:$0xff]
      %v718 = vld [vmem:[%s5 + $0x68] sm:$0xff]
      %v719 = vld [vmem:[%s5 + $0x70] sm:$0xff]
      %v720 = vld [vmem:[%s5 + $0x78] sm:$0xff]
      %v721 = vld [vmem:[%s6] sm:$0x1]
      %v723 = vlaneseq
      %v724 = vshrl.u32 %v723, 7
      %v725 = vsub.s32 0, %v724
      %v726 = vrot.slane %v721, %v725
      %728 = vmatprep.subr.mxu0 0.0
      %729 = vmatpush1.msra.mxu0 %v705
      %730 = vmatprep.subr.mxu0 0.0
      %731 = vmatpush1.msra.mxu0 %v706
      %732 = vmatprep.subr.mxu0 0.0
      %733 = vmatpush1.msra.mxu0 %v707
      %734 = vmatprep.subr.mxu0 0.0
      %735 = vmatpush1.msra.mxu0 %v708
      %736 = vmatprep.subr.mxu0 0.0
      %737 = vmatpush1.msra.mxu0 %v709
      %738 = vmatprep.subr.mxu0 0.0
      %739 = vmatpush1.msra.mxu0 %v710
      %740 = vmatprep.subr.mxu0 0.0
      %741 = vmatpush1.msra.mxu0 %v711
      %742 = vmatprep.subr.mxu0 0.0
      %743 = vmatpush1.msra.mxu0 %v712
      %744 = vmatprep.subr.mxu0 0.0
      %745 = vmatpush1.msra.mxu0 %v713
      %746 = vmatprep.subr.mxu0 0.0
      %747 = vmatpush1.msra.mxu0 %v714
      %748 = vmatprep.subr.mxu0 0.0
      %749 = vmatpush1.msra.mxu0 %v715
      %750 = vmatprep.subr.mxu0 0.0
      %751 = vmatpush1.msra.mxu0 %v716
      %752 = vmatprep.subr.mxu0 0.0
      %753 = vmatpush1.msra.mxu0 %v717
      %754 = vmatprep.subr.mxu0 0.0
      %755 = vmatpush1.msra.mxu0 %v718
      %756 = vmatprep.subr.mxu0 0.0
      %757 = vmatpush1.msra.mxu0 %v719
      %758 = vmatprep.subr.mxu0 0.0
      %759 = vmatpush1.msra.mxu0 %v720
      %760 = vmatprep.subr.mxu0 0.0
      %761 = vmatpush1.msra.mxu0 0.0
      %762 = vmatprep.subr.mxu0 0.0
      %763 = vmatpush1.msra.mxu0 0.0
      %764 = vmatprep.subr.mxu0 0.0
      %765 = vmatpush1.msra.mxu0 0.0
      %766 = vmatprep.subr.mxu0 0.0
      %767 = vmatpush1.msra.mxu0 0.0
      %768 = vmatprep.subr.mxu0 0.0
      %769 = vmatpush1.msra.mxu0 0.0
      %770 = vmatprep.subr.mxu0 0.0
      %771 = vmatpush1.msra.mxu0 0.0
      %772 = vmatprep.subr.mxu0 0.0
      %773 = vmatpush1.msra.mxu0 0.0
      %774 = vmatprep.subr.mxu0 0.0
      %775 = vmatpush1.msra.mxu0 0.0
      %776 = vmatprep.subr.mxu0 0.0
      %777 = vmatpush1.msra.mxu0 0.0
      %778 = vmatprep.subr.mxu0 0.0
      %779 = vmatpush1.msra.mxu0 0.0
      %780 = vmatprep.subr.mxu0 0.0
      %781 = vmatpush1.msra.mxu0 0.0
      %782 = vmatprep.subr.mxu0 0.0
      %783 = vmatpush1.msra.mxu0 0.0
      %784 = vmatprep.subr.mxu0 0.0
      %785 = vmatpush1.msra.mxu0 0.0
      %786 = vmatprep.subr.mxu0 0.0
      %787 = vmatpush1.msra.mxu0 0.0
      %788 = vmatprep.subr.mxu0 0.0
      %789 = vmatpush1.msra.mxu0 0.0
      %790 = vmatprep.subr.mxu0 0.0
      %791 = vmatpush1.msra.mxu0 0.0
      %792 = vmatprep.mubr.f32.mxu0 0.0
      %793 = vmatmul.mubr.f32.gmra.mrb[0].mxu0 %v704
      %v794 = vpop.f32.mrb[0].mxu0
      %v795 = vadd.f32 %v726, %v794
      %v796 = vpop.f32.mrb[0].mxu0
      %797 = vdwg.mxu0
      %vm798 = vcmp.ge.f32.partialorder %v795, 0.0
      %v799 = vmul.f32 %v795, 0.1
      %v800 = vsel %vm798, %v795, %v799
      %v801 = vld [vmem:[%s7] sm:$0xff]
      %v802 = vld [vmem:[%s7 + $0x8] sm:$0xff]
      %v803 = vld [vmem:[%s7 + $0x10] sm:$0xff]
      %v804 = vld [vmem:[%s7 + $0x18] sm:$0xff]
      %v805 = vld [vmem:[%s7 + $0x20] sm:$0xff]
      %v806 = vld [vmem:[%s7 + $0x28] sm:$0xff]
      %v807 = vld [vmem:[%s7 + $0x30] sm:$0xff]
      %v808 = vld [vmem:[%s7 + $0x38] sm:$0xff]
      %v809 = vld [vmem:[%s7 + $0x40] sm:$0xff]
      %v810 = vld [vmem:[%s7 + $0x48] sm:$0xff]
      %v811 = vld [vmem:[%s7 + $0x50] sm:$0xff]
      %v812 = vld [vmem:[%s7 + $0x58] sm:$0xff]
      %v813 = vld [vmem:[%s7 + $0x60] sm:$0xff]
      %v814 = vld [vmem:[%s7 + $0x68] sm:$0xff]
      %v815 = vld [vmem:[%s7 + $0x70] sm:$0xff]
      %v816 = vld [vmem:[%s7 + $0x78] sm:$0xff]
      %v817 = vld [vmem:[%s8] sm:$0x1]
      %v819 = vlaneseq
      %v820 = vshrl.u32 %v819, 7
      %v821 = vsub.s32 0, %v820
      %v822 = vrot.slane %v817, %v821
      %824 = vmatprep.subr.mxu0 0.0
      %825 = vmatpush1.msra.mxu0 %v801
      %826 = vmatprep.subr.mxu0 0.0
      %827 = vmatpush1.msra.mxu0 %v802
      %828 = vmatprep.subr.mxu0 0.0
      %829 = vmatpush1.msra.mxu0 %v803
      %830 = vmatprep.subr.mxu0 0.0
      %831 = vmatpush1.msra.mxu0 %v804
      %832 = vmatprep.subr.mxu0 0.0
      %833 = vmatpush1.msra.mxu0 %v805
      %834 = vmatprep.subr.mxu0 0.0
      %835 = vmatpush1.msra.mxu0 %v806
      %836 = vmatprep.subr.mxu0 0.0
      %837 = vmatpush1.msra.mxu0 %v807
      %838 = vmatprep.subr.mxu0 0.0
      %839 = vmatpush1.msra.mxu0 %v808
      %840 = vmatprep.subr.mxu0 0.0
      %841 = vmatpush1.msra.mxu0 %v809
      %842 = vmatprep.subr.mxu0 0.0
      %843 = vmatpush1.msra.mxu0 %v810
      %844 = vmatprep.subr.mxu0 0.0
      %845 = vmatpush1.msra.mxu0 %v811
      %846 = vmatprep.subr.mxu0 0.0
      %847 = vmatpush1.msra.mxu0 %v812
      %848 = vmatprep.subr.mxu0 0.0
      %849 = vmatpush1.msra.mxu0 %v813
      %850 = vmatprep.subr.mxu0 0.0
      %851 = vmatpush1.msra.mxu0 %v814
      %852 = vmatprep.subr.mxu0 0.0
      %853 = vmatpush1.msra.mxu0 %v815
      %854 = vmatprep.subr.mxu0 0.0
      %855 = vmatpush1.msra.mxu0 %v816
      %856 = vmatprep.subr.mxu0 0.0
      %857 = vmatpush1.msra.mxu0 0.0
      %858 = vmatprep.subr.mxu0 0.0
      %859 = vmatpush1.msra.mxu0 0.0
      %860 = vmatprep.subr.mxu0 0.0
      %861 = vmatpush1.msra.mxu0 0.0
      %862 = vmatprep.subr.mxu0 0.0
      %863 = vmatpush1.msra.mxu0 0.0
      %864 = vmatprep.subr.mxu0 0.0
      %865 = vmatpush1.msra.mxu0 0.0
      %866 = vmatprep.subr.mxu0 0.0
      %867 = vmatpush1.msra.mxu0 0.0
      %868 = vmatprep.subr.mxu0 0.0
      %869 = vmatpush1.msra.mxu0 0.0
      %870 = vmatprep.subr.mxu0 0.0
      %871 = vmatpush1.msra.mxu0 0.0
      %872 = vmatprep.subr.mxu0 0.0
      %873 = vmatpush1.msra.mxu0 0.0
      %874 = vmatprep.subr.mxu0 0.0
      %875 = vmatpush1.msra.mxu0 0.0
      %876 = vmatprep.subr.mxu0 0.0
      %877 = vmatpush1.msra.mxu0 0.0
      %878 = vmatprep.subr.mxu0 0.0
      %879 = vmatpush1.msra.mxu0 0.0
      %880 = vmatprep.subr.mxu0 0.0
      %881 = vmatpush1.msra.mxu0 0.0
      %882 = vmatprep.subr.mxu0 0.0
      %883 = vmatpush1.msra.mxu0 0.0
      %884 = vmatprep.subr.mxu0 0.0
      %885 = vmatpush1.msra.mxu0 0.0
      %886 = vmatprep.subr.mxu0 0.0
      %887 = vmatpush1.msra.mxu0 0.0
      %888 = vmatprep.mubr.f32.mxu0 0.0
      %889 = vmatmul.mubr.f32.gmra.mrb[0].mxu0 %v800
      %v890 = vpop.f32.mrb[0].mxu0
      %v891 = vadd.f32 %v822, %v890
      %v892 = vpop.f32.mrb[0].mxu0
      %893 = vdwg.mxu0
      %v894 = vld [vmem:[%s683] sm:$0xff]
      %v895 = vld [vmem:[%s9] sm:$0xff]
      %v896 = vld [vmem:[%s9 + $0x8] sm:$0xff]
      %v897 = vld [vmem:[%s9 + $0x10] sm:$0xff]
      %v898 = vld [vmem:[%s9 + $0x18] sm:$0xff]
      %v899 = vld [vmem:[%s9 + $0x20] sm:$0xff]
      %v900 = vld [vmem:[%s9 + $0x28] sm:$0xff]
      %v901 = vld [vmem:[%s9 + $0x30] sm:$0xff]
      %v902 = vld [vmem:[%s9 + $0x38] sm:$0xff]
      %v903 = vld [vmem:[%s9 + $0x40] sm:$0xff]
      %v904 = vld [vmem:[%s9 + $0x48] sm:$0xff]
      %v905 = vld [vmem:[%s9 + $0x50] sm:$0xff]
      %v906 = vld [vmem:[%s9 + $0x58] sm:$0xff]
      %v907 = vld [vmem:[%s9 + $0x60] sm:$0xff]
      %v908 = vld [vmem:[%s9 + $0x68] sm:$0xff]
      %v909 = vld [vmem:[%s9 + $0x70] sm:$0xff]
      %v910 = vld [vmem:[%s9 + $0x78] sm:$0xff]
      %v911 = vld [vmem:[%s10] sm:$0x1]
      %v913 = vlaneseq
      %v914 = vshrl.u32 %v913, 7
      %v915 = vsub.s32 0, %v914
      %v916 = vrot.slane %v911, %v915
      %918 = vmatprep.subr.mxu0 0.0
      %919 = vmatpush1.msra.mxu0 %v895
      %920 = vmatprep.subr.mxu0 0.0
      %921 = vmatpush1.msra.mxu0 %v896
      %922 = vmatprep.subr.mxu0 0.0
      %923 = vmatpush1.msra.mxu0 %v897
      %924 = vmatprep.subr.mxu0 0.0
      %925 = vmatpush1.msra.mxu0 %v898
      %926 = vmatprep.subr.mxu0 0.0
      %927 = vmatpush1.msra.mxu0 %v899
      %928 = vmatprep.subr.mxu0 0.0
      %929 = vmatpush1.msra.mxu0 %v900
      %930 = vmatprep.subr.mxu0 0.0
      %931 = vmatpush1.msra.mxu0 %v901
      %932 = vmatprep.subr.mxu0 0.0
      %933 = vmatpush1.msra.mxu0 %v902
      %934 = vmatprep.subr.mxu0 0.0
      %935 = vmatpush1.msra.mxu0 %v903
      %936 = vmatprep.subr.mxu0 0.0
      %937 = vmatpush1.msra.mxu0 %v904
      %938 = vmatprep.subr.mxu0 0.0
      %939 = vmatpush1.msra.mxu0 %v905
      %940 = vmatprep.subr.mxu0 0.0
      %941 = vmatpush1.msra.mxu0 %v906
      %942 = vmatprep.subr.mxu0 0.0
      %943 = vmatpush1.msra.mxu0 %v907
      %944 = vmatprep.subr.mxu0 0.0
      %945 = vmatpush1.msra.mxu0 %v908
      %946 = vmatprep.subr.mxu0 0.0
      %947 = vmatpush1.msra.mxu0 %v909
      %948 = vmatprep.subr.mxu0 0.0
      %949 = vmatpush1.msra.mxu0 %v910
      %950 = vmatprep.subr.mxu0 0.0
      %951 = vmatpush1.msra.mxu0 0.0
      %952 = vmatprep.subr.mxu0 0.0
      %953 = vmatpush1.msra.mxu0 0.0
      %954 = vmatprep.subr.mxu0 0.0
      %955 = vmatpush1.msra.mxu0 0.0
      %956 = vmatprep.subr.mxu0 0.0
      %957 = vmatpush1.msra.mxu0 0.0
      %958 = vmatprep.subr.mxu0 0.0
      %959 = vmatpush1.msra.mxu0 0.0
      %960 = vmatprep.subr.mxu0 0.0
      %961 = vmatpush1.msra.mxu0 0.0
      %962 = vmatprep.subr.mxu0 0.0
      %963 = vmatpush1.msra.mxu0 0.0
      %964 = vmatprep.subr.mxu0 0.0
      %965 = vmatpush1.msra.mxu0 0.0
      %966 = vmatprep.subr.mxu0 0.0
      %967 = vmatpush1.msra.mxu0 0.0
      %968 = vmatprep.subr.mxu0 0.0
      %969 = vmatpush1.msra.mxu0 0.0
      %970 = vmatprep.subr.mxu0 0.0
      %971 = vmatpush1.msra.mxu0 0.0
      %972 = vmatprep.subr.mxu0 0.0
      %973 = vmatpush1.msra.mxu0 0.0
      %974 = vmatprep.subr.mxu0 0.0
      %975 = vmatpush1.msra.mxu0 0.0
      %976 = vmatprep.subr.mxu0 0.0
      %977 = vmatpush1.msra.mxu0 0.0
      %978 = vmatprep.subr.mxu0 0.0
      %979 = vmatpush1.msra.mxu0 0.0
      %980 = vmatprep.subr.mxu0 0.0
      %981 = vmatpush1.msra.mxu0 0.0
      %982 = vmatprep.mubr.f32.mxu0 0.0
      %983 = vmatmul.mubr.f32.gmra.mrb[0].mxu0 %v894
      %v984 = vpop.f32.mrb[0].mxu0
      %v985 = vadd.f32 %v916, %v984
      %v986 = vpop.f32.mrb[0].mxu0
      %987 = vdwg.mxu0
      %vm988 = vcmp.ge.f32.partialorder %v985, 0.0
      %v989 = vmul.f32 %v985, 0.1
      %v990 = vsel %vm988, %v985, %v989
      %v991 = vld [vmem:[%s11] sm:$0xff]
      %v992 = vld [vmem:[%s11 + $0x8] sm:$0xff]
      %v993 = vld [vmem:[%s11 + $0x10] sm:$0xff]
      %v994 = vld [vmem:[%s11 + $0x18] sm:$0xff]
      %v995 = vld [vmem:[%s11 + $0x20] sm:$0xff]
      %v996 = vld [vmem:[%s11 + $0x28] sm:$0xff]
      %v997 = vld [vmem:[%s11 + $0x30] sm:$0xff]
      %v998 = vld [vmem:[%s11 + $0x38] sm:$0xff]
      %v999 = vld [vmem:[%s11 + $0x40] sm:$0xff]
      %v1000 = vld [vmem:[%s11 + $0x48] sm:$0xff]
      %v1001 = vld [vmem:[%s11 + $0x50] sm:$0xff]
      %v1002 = vld [vmem:[%s11 + $0x58] sm:$0xff]
      %v1003 = vld [vmem:[%s11 + $0x60] sm:$0xff]
      %v1004 = vld [vmem:[%s11 + $0x68] sm:$0xff]
      %v1005 = vld [vmem:[%s11 + $0x70] sm:$0xff]
      %v1006 = vld [vmem:[%s11 + $0x78] sm:$0xff]
      %v1007 = vld [vmem:[%s12] sm:$0x1]
      %v1009 = vlaneseq
      %v1010 = vshrl.u32 %v1009, 7
      %v1011 = vsub.s32 0, %v1010
      %v1012 = vrot.slane %v1007, %v1011
      %1014 = vmatprep.subr.mxu0 0.0
      %1015 = vmatpush1.msra.mxu0 %v991
      %1016 = vmatprep.subr.mxu0 0.0
      %1017 = vmatpush1.msra.mxu0 %v992
      %1018 = vmatprep.subr.mxu0 0.0
      %1019 = vmatpush1.msra.mxu0 %v993
      %1020 = vmatprep.subr.mxu0 0.0
      %1021 = vmatpush1.msra.mxu0 %v994
      %1022 = vmatprep.subr.mxu0 0.0
      %1023 = vmatpush1.msra.mxu0 %v995
      %1024 = vmatprep.subr.mxu0 0.0
      %1025 = vmatpush1.msra.mxu0 %v996
      %1026 = vmatprep.subr.mxu0 0.0
      %1027 = vmatpush1.msra.mxu0 %v997
      %1028 = vmatprep.subr.mxu0 0.0
      %1029 = vmatpush1.msra.mxu0 %v998
      %1030 = vmatprep.subr.mxu0 0.0
      %1031 = vmatpush1.msra.mxu0 %v999
      %1032 = vmatprep.subr.mxu0 0.0
      %1033 = vmatpush1.msra.mxu0 %v1000
      %1034 = vmatprep.subr.mxu0 0.0
      %1035 = vmatpush1.msra.mxu0 %v1001
      %1036 = vmatprep.subr.mxu0 0.0
      %1037 = vmatpush1.msra.mxu0 %v1002
      %1038 = vmatprep.subr.mxu0 0.0
      %1039 = vmatpush1.msra.mxu0 %v1003
      %1040 = vmatprep.subr.mxu0 0.0
      %1041 = vmatpush1.msra.mxu0 %v1004
      %1042 = vmatprep.subr.mxu0 0.0
      %1043 = vmatpush1.msra.mxu0 %v1005
      %1044 = vmatprep.subr.mxu0 0.0
      %1045 = vmatpush1.msra.mxu0 %v1006
      %1046 = vmatprep.subr.mxu0 0.0
      %1047 = vmatpush1.msra.mxu0 0.0
      %1048 = vmatprep.subr.mxu0 0.0
      %1049 = vmatpush1.msra.mxu0 0.0
      %1050 = vmatprep.subr.mxu0 0.0
      %1051 = vmatpush1.msra.mxu0 0.0
      %1052 = vmatprep.subr.mxu0 0.0
      %1053 = vmatpush1.msra.mxu0 0.0
      %1054 = vmatprep.subr.mxu0 0.0
      %1055 = vmatpush1.msra.mxu0 0.0
      %1056 = vmatprep.subr.mxu0 0.0
      %1057 = vmatpush1.msra.mxu0 0.0
      %1058 = vmatprep.subr.mxu0 0.0
      %1059 = vmatpush1.msra.mxu0 0.0
      %1060 = vmatprep.subr.mxu0 0.0
      %1061 = vmatpush1.msra.mxu0 0.0
      %1062 = vmatprep.subr.mxu0 0.0
      %1063 = vmatpush1.msra.mxu0 0.0
      %1064 = vmatprep.subr.mxu0 0.0
      %1065 = vmatpush1.msra.mxu0 0.0
      %1066 = vmatprep.subr.mxu0 0.0
      %1067 = vmatpush1.msra.mxu0 0.0
      %1068 = vmatprep.subr.mxu0 0.0
      %1069 = vmatpush1.msra.mxu0 0.0
      %1070 = vmatprep.subr.mxu0 0.0
      %1071 = vmatpush1.msra.mxu0 0.0
      %1072 = vmatprep.subr.mxu0 0.0
      %1073 = vmatpush1.msra.mxu0 0.0
      %1074 = vmatprep.subr.mxu0 0.0
      %1075 = vmatpush1.msra.mxu0 0.0
      %1076 = vmatprep.subr.mxu0 0.0
      %1077 = vmatpush1.msra.mxu0 0.0
      %1078 = vmatprep.mubr.f32.mxu0 0.0
      %1079 = vmatmul.mubr.f32.gmra.mrb[0].mxu0 %v990
      %v1080 = vpop.f32.mrb[0].mxu0
      %v1081 = vadd.f32 %v1012, %v1080
      %v1082 = vpop.f32.mrb[0].mxu0
      %1083 = vdwg.mxu0
      %v1084 = vld [vmem:[%s691] sm:$0xff]
      %v1085 = vmul.f32 %v1084, %v891
      %v1086 = vld [vmem:[%s695] sm:$0xff]
      %v1087 = vadd.f32 %v1085, %v1086
      %v1088 = vld [vmem:[%s13] sm:$0xff]
      %v1089 = vld [vmem:[%s13 + $0x8] sm:$0xff]
      %v1090 = vld [vmem:[%s13 + $0x10] sm:$0xff]
      %v1091 = vld [vmem:[%s13 + $0x18] sm:$0xff]
      %v1092 = vld [vmem:[%s13 + $0x20] sm:$0xff]
      %v1093 = vld [vmem:[%s13 + $0x28] sm:$0xff]
      %v1094 = vld [vmem:[%s13 + $0x30] sm:$0xff]
      %v1095 = vld [vmem:[%s13 + $0x38] sm:$0xff]
      %v1096 = vld [vmem:[%s13 + $0x40] sm:$0xff]
      %v1097 = vld [vmem:[%s13 + $0x48] sm:$0xff]
      %v1098 = vld [vmem:[%s13 + $0x50] sm:$0xff]
      %v1099 = vld [vmem:[%s13 + $0x58] sm:$0xff]
      %v1100 = vld [vmem:[%s13 + $0x60] sm:$0xff]
      %v1101 = vld [vmem:[%s13 + $0x68] sm:$0xff]
      %v1102 = vld [vmem:[%s13 + $0x70] sm:$0xff]
      %v1103 = vld [vmem:[%s13 + $0x78] sm:$0xff]
      %v1104 = vld [vmem:[%s14] sm:$0xff]
      %v1105 = vld [vmem:[%s14 + $0x8] sm:$0xff]
      %v1106 = vld [vmem:[%s14 + $0x10] sm:$0xff]
      %v1107 = vld [vmem:[%s14 + $0x18] sm:$0xff]
      %v1108 = vld [vmem:[%s14 + $0x20] sm:$0xff]
      %v1109 = vld [vmem:[%s14 + $0x28] sm:$0xff]
      %v1110 = vld [vmem:[%s14 + $0x30] sm:$0xff]
      %v1111 = vld [vmem:[%s14 + $0x38] sm:$0xff]
      %v1112 = vld [vmem:[%s14 + $0x40] sm:$0xff]
      %v1113 = vld [vmem:[%s14 + $0x48] sm:$0xff]
      %v1114 = vld [vmem:[%s14 + $0x50] sm:$0xff]
      %v1115 = vld [vmem:[%s14 + $0x58] sm:$0xff]
      %v1116 = vld [vmem:[%s14 + $0x60] sm:$0xff]
      %v1117 = vld [vmem:[%s14 + $0x68] sm:$0xff]
      %v1118 = vld [vmem:[%s14 + $0x70] sm:$0xff]
      %v1119 = vld [vmem:[%s14 + $0x78] sm:$0xff]
      %1120 = vmatprep.subr.mxu0 0.0
      %1121 = vmatpush1.msra.mxu0 %v1104
      %1122 = vmatprep.subr.mxu0 0.0
      %1123 = vmatpush1.msra.mxu0 %v1105
      %1124 = vmatprep.subr.mxu0 0.0
      %1125 = vmatpush1.msra.mxu0 %v1106
      %1126 = vmatprep.subr.mxu0 0.0
      %1127 = vmatpush1.msra.mxu0 %v1107
      %1128 = vmatprep.subr.mxu0 0.0
      %1129 = vmatpush1.msra.mxu0 %v1108
      %1130 = vmatprep.subr.mxu0 0.0
      %1131 = vmatpush1.msra.mxu0 %v1109
      %1132 = vmatprep.subr.mxu0 0.0
      %1133 = vmatpush1.msra.mxu0 %v1110
      %1134 = vmatprep.subr.mxu0 0.0
      %1135 = vmatpush1.msra.mxu0 %v1111
      %1136 = vmatprep.subr.mxu0 0.0
      %1137 = vmatpush1.msra.mxu0 %v1112
      %1138 = vmatprep.subr.mxu0 0.0
      %1139 = vmatpush1.msra.mxu0 %v1113
      %1140 = vmatprep.subr.mxu0 0.0
      %1141 = vmatpush1.msra.mxu0 %v1114
      %1142 = vmatprep.subr.mxu0 0.0
      %1143 = vmatpush1.msra.mxu0 %v1115
      %1144 = vmatprep.subr.mxu0 0.0
      %1145 = vmatpush1.msra.mxu0 %v1116
      %1146 = vmatprep.subr.mxu0 0.0
      %1147 = vmatpush1.msra.mxu0 %v1117
      %1148 = vmatprep.subr.mxu0 0.0
      %1149 = vmatpush1.msra.mxu0 %v1118
      %1150 = vmatprep.subr.mxu0 0.0
      %1151 = vmatpush1.msra.mxu0 %v1119
      %1152 = vmatprep.subr.mxu0 0.0
      %1153 = vmatpush1.msra.mxu0 0.0
      %1154 = vmatprep.subr.mxu0 0.0
      %1155 = vmatpush1.msra.mxu0 0.0
      %1156 = vmatprep.subr.mxu0 0.0
      %1157 = vmatpush1.msra.mxu0 0.0
      %1158 = vmatprep.subr.mxu0 0.0
      %1159 = vmatpush1.msra.mxu0 0.0
      %1160 = vmatprep.subr.mxu0 0.0
      %1161 = vmatpush1.msra.mxu0 0.0
      %1162 = vmatprep.subr.mxu0 0.0
      %1163 = vmatpush1.msra.mxu0 0.0
      %1164 = vmatprep.subr.mxu0 0.0
      %1165 = vmatpush1.msra.mxu0 0.0
      %1166 = vmatprep.subr.mxu0 0.0
      %1167 = vmatpush1.msra.mxu0 0.0
      %1168 = vmatprep.subr.mxu0 0.0
      %1169 = vmatpush1.msra.mxu0 0.0
      %1170 = vmatprep.subr.mxu0 0.0
      %1171 = vmatpush1.msra.mxu0 0.0
      %1172 = vmatprep.subr.mxu0 0.0
      %1173 = vmatpush1.msra.mxu0 0.0
      %1174 = vmatprep.subr.mxu0 0.0
      %1175 = vmatpush1.msra.mxu0 0.0
      %1176 = vmatprep.subr.mxu0 0.0
      %1177 = vmatpush1.msra.mxu0 0.0
      %1178 = vmatprep.subr.mxu0 0.0
      %1179 = vmatpush1.msra.mxu0 0.0
      %1180 = vmatprep.subr.mxu0 0.0
      %1181 = vmatpush1.msra.mxu0 0.0
      %1182 = vmatprep.subr.mxu0 0.0
      %1183 = vmatpush1.msra.mxu0 0.0
      %1184 = vmatprep.mubr.f32.mxu0 0.0
      %1185 = vmatmul.mubr.f32.gmra.mrb[0].mxu0 %v1087
      %v1186 = vpop.f32.mrb[0].mxu0
      %v1187 = vadd.f32 0.0, %v1186
      %v1188 = vpop.f32.mrb[0].mxu0
      %1189 = vdwg.mxu0
      %1190 = vmatprep.subr.mxu0 0.0
      %1191 = vmatpush1.msra.mxu0 %v1088
      %1192 = vmatprep.subr.mxu0 0.0
      %1193 = vmatpush1.msra.mxu0 %v1089
      %1194 = vmatprep.subr.mxu0 0.0
      %1195 = vmatpush1.msra.mxu0 %v1090
      %1196 = vmatprep.subr.mxu0 0.0
      %1197 = vmatpush1.msra.mxu0 %v1091
      %1198 = vmatprep.subr.mxu0 0.0
      %1199 = vmatpush1.msra.mxu0 %v1092
      %1200 = vmatprep.subr.mxu0 0.0
      %1201 = vmatpush1.msra.mxu0 %v1093
      %1202 = vmatprep.subr.mxu0 0.0
      %1203 = vmatpush1.msra.mxu0 %v1094
      %1204 = vmatprep.subr.mxu0 0.0
      %1205 = vmatpush1.msra.mxu0 %v1095
      %1206 = vmatprep.subr.mxu0 0.0
      %1207 = vmatpush1.msra.mxu0 %v1096
      %1208 = vmatprep.subr.mxu0 0.0
      %1209 = vmatpush1.msra.mxu0 %v1097
      %1210 = vmatprep.subr.mxu0 0.0
      %1211 = vmatpush1.msra.mxu0 %v1098
      %1212 = vmatprep.subr.mxu0 0.0
      %1213 = vmatpush1.msra.mxu0 %v1099
      %1214 = vmatprep.subr.mxu0 0.0
      %1215 = vmatpush1.msra.mxu0 %v1100
      %1216 = vmatprep.subr.mxu0 0.0
      %1217 = vmatpush1.msra.mxu0 %v1101
      %1218 = vmatprep.subr.mxu0 0.0
      %1219 = vmatpush1.msra.mxu0 %v1102
      %1220 = vmatprep.subr.mxu0 0.0
      %1221 = vmatpush1.msra.mxu0 %v1103
      %1222 = vmatprep.subr.mxu0 0.0
      %1223 = vmatpush1.msra.mxu0 0.0
      %1224 = vmatprep.subr.mxu0 0.0
      %1225 = vmatpush1.msra.mxu0 0.0
      %1226 = vmatprep.subr.mxu0 0.0
      %1227 = vmatpush1.msra.mxu0 0.0
      %1228 = vmatprep.subr.mxu0 0.0
      %1229 = vmatpush1.msra.mxu0 0.0
      %1230 = vmatprep.subr.mxu0 0.0
      %1231 = vmatpush1.msra.mxu0 0.0
      %1232 = vmatprep.subr.mxu0 0.0
      %1233 = vmatpush1.msra.mxu0 0.0
      %1234 = vmatprep.subr.mxu0 0.0
      %1235 = vmatpush1.msra.mxu0 0.0
      %1236 = vmatprep.subr.mxu0 0.0
      %1237 = vmatpush1.msra.mxu0 0.0
      %1238 = vmatprep.subr.mxu0 0.0
      %1239 = vmatpush1.msra.mxu0 0.0
      %1240 = vmatprep.subr.mxu0 0.0
      %1241 = vmatpush1.msra.mxu0 0.0
      %1242 = vmatprep.subr.mxu0 0.0
      %1243 = vmatpush1.msra.mxu0 0.0
      %1244 = vmatprep.subr.mxu0 0.0
      %1245 = vmatpush1.msra.mxu0 0.0
      %1246 = vmatprep.subr.mxu0 0.0
      %1247 = vmatpush1.msra.mxu0 0.0
      %1248 = vmatprep.subr.mxu0 0.0
      %1249 = vmatpush1.msra.mxu0 0.0
      %1250 = vmatprep.subr.mxu0 0.0
      %1251 = vmatpush1.msra.mxu0 0.0
      %1252 = vmatprep.subr.mxu0 0.0
      %1253 = vmatpush1.msra.mxu0 0.0
      %1254 = vmatprep.mubr.f32.mxu0 0.0
      %1255 = vmatmul.mubr.f32.gmra.mrb[0].mxu0 %v891
      %v1256 = vpop.f32.mrb[0].mxu0
      %v1257 = vadd.f32 %v1187, %v1256
      %v1258 = vpop.f32.mrb[0].mxu0
      %1259 = vdwg.mxu0
      %v1260 = vld [vmem:[%s15] sm:$0x1]
      %v1262 = vlaneseq
      %v1263 = vshrl.u32 %v1262, 7
      %v1264 = vsub.s32 0, %v1263
      %v1265 = vrot.slane %v1260, %v1264
      %v1267 = vadd.f32 %v1257, %v1265
      %v1268 = vld [vmem:[%s687] sm:$0xff]
      %v1269 = vld [vmem:[%s16] sm:$0xff]
      %v1270 = vld [vmem:[%s16 + $0x8] sm:$0xff]
      %v1271 = vld [vmem:[%s16 + $0x10] sm:$0xff]
      %v1272 = vld [vmem:[%s16 + $0x18] sm:$0xff]
      %v1273 = vld [vmem:[%s16 + $0x20] sm:$0xff]
      %v1274 = vld [vmem:[%s16 + $0x28] sm:$0xff]
      %v1275 = vld [vmem:[%s16 + $0x30] sm:$0xff]
      %v1276 = vld [vmem:[%s16 + $0x38] sm:$0xff]
      %v1277 = vld [vmem:[%s16 + $0x40] sm:$0xff]
      %v1278 = vld [vmem:[%s16 + $0x48] sm:$0xff]
      %v1279 = vld [vmem:[%s16 + $0x50] sm:$0xff]
      %v1280 = vld [vmem:[%s16 + $0x58] sm:$0xff]
      %v1281 = vld [vmem:[%s16 + $0x60] sm:$0xff]
      %v1282 = vld [vmem:[%s16 + $0x68] sm:$0xff]
      %v1283 = vld [vmem:[%s16 + $0x70] sm:$0xff]
      %v1284 = vld [vmem:[%s16 + $0x78] sm:$0xff]
      %v1285 = vld [vmem:[%s17] sm:$0xff]
      %v1286 = vld [vmem:[%s17 + $0x8] sm:$0xff]
      %v1287 = vld [vmem:[%s17 + $0x10] sm:$0xff]
      %v1288 = vld [vmem:[%s17 + $0x18] sm:$0xff]
      %v1289 = vld [vmem:[%s17 + $0x20] sm:$0xff]
      %v1290 = vld [vmem:[%s17 + $0x28] sm:$0xff]
      %v1291 = vld [vmem:[%s17 + $0x30] sm:$0xff]
      %v1292 = vld [vmem:[%s17 + $0x38] sm:$0xff]
      %v1293 = vld [vmem:[%s17 + $0x40] sm:$0xff]
      %v1294 = vld [vmem:[%s17 + $0x48] sm:$0xff]
      %v1295 = vld [vmem:[%s17 + $0x50] sm:$0xff]
      %v1296 = vld [vmem:[%s17 + $0x58] sm:$0xff]
      %v1297 = vld [vmem:[%s17 + $0x60] sm:$0xff]
      %v1298 = vld [vmem:[%s17 + $0x68] sm:$0xff]
      %v1299 = vld [vmem:[%s17 + $0x70] sm:$0xff]
      %v1300 = vld [vmem:[%s17 + $0x78] sm:$0xff]
      %1301 = vmatprep.subr.mxu0 0.0
      %1302 = vmatpush1.msra.mxu0 %v1285
      %1303 = vmatprep.subr.mxu0 0.0
      %1304 = vmatpush1.msra.mxu0 %v1286
      %1305 = vmatprep.subr.mxu0 0.0
      %1306 = vmatpush1.msra.mxu0 %v1287
      %1307 = vmatprep.subr.mxu0 0.0
      %1308 = vmatpush1.msra.mxu0 %v1288
      %1309 = vmatprep.subr.mxu0 0.0
      %1310 = vmatpush1.msra.mxu0 %v1289
      %1311 = vmatprep.subr.mxu0 0.0
      %1312 = vmatpush1.msra.mxu0 %v1290
      %1313 = vmatprep.subr.mxu0 0.0
      %1314 = vmatpush1.msra.mxu0 %v1291
      %1315 = vmatprep.subr.mxu0 0.0
      %1316 = vmatpush1.msra.mxu0 %v1292
      %1317 = vmatprep.subr.mxu0 0.0
      %1318 = vmatpush1.msra.mxu0 %v1293
      %1319 = vmatprep.subr.mxu0 0.0
      %1320 = vmatpush1.msra.mxu0 %v1294
      %1321 = vmatprep.subr.mxu0 0.0
      %1322 = vmatpush1.msra.mxu0 %v1295
      %1323 = vmatprep.subr.mxu0 0.0
      %1324 = vmatpush1.msra.mxu0 %v1296
      %1325 = vmatprep.subr.mxu0 0.0
      %1326 = vmatpush1.msra.mxu0 %v1297
      %1327 = vmatprep.subr.mxu0 0.0
      %1328 = vmatpush1.msra.mxu0 %v1298
      %1329 = vmatprep.subr.mxu0 0.0
      %1330 = vmatpush1.msra.mxu0 %v1299
      %1331 = vmatprep.subr.mxu0 0.0
      %1332 = vmatpush1.msra.mxu0 %v1300
      %1333 = vmatprep.subr.mxu0 0.0
      %1334 = vmatpush1.msra.mxu0 0.0
      %1335 = vmatprep.subr.mxu0 0.0
      %1336 = vmatpush1.msra.mxu0 0.0
      %1337 = vmatprep.subr.mxu0 0.0
      %1338 = vmatpush1.msra.mxu0 0.0
      %1339 = vmatprep.subr.mxu0 0.0
      %1340 = vmatpush1.msra.mxu0 0.0
      %1341 = vmatprep.subr.mxu0 0.0
      %1342 = vmatpush1.msra.mxu0 0.0
      %1343 = vmatprep.subr.mxu0 0.0
      %1344 = vmatpush1.msra.mxu0 0.0
      %1345 = vmatprep.subr.mxu0 0.0
      %1346 = vmatpush1.msra.mxu0 0.0
      %1347 = vmatprep.subr.mxu0 0.0
      %1348 = vmatpush1.msra.mxu0 0.0
      %1349 = vmatprep.subr.mxu0 0.0
      %1350 = vmatpush1.msra.mxu0 0.0
      %1351 = vmatprep.subr.mxu0 0.0
      %1352 = vmatpush1.msra.mxu0 0.0
      %1353 = vmatprep.subr.mxu0 0.0
      %1354 = vmatpush1.msra.mxu0 0.0
      %1355 = vmatprep.subr.mxu0 0.0
      %1356 = vmatpush1.msra.mxu0 0.0
      %1357 = vmatprep.subr.mxu0 0.0
      %1358 = vmatpush1.msra.mxu0 0.0
      %1359 = vmatprep.subr.mxu0 0.0
      %1360 = vmatpush1.msra.mxu0 0.0
      %1361 = vmatprep.subr.mxu0 0.0
      %1362 = vmatpush1.msra.mxu0 0.0
      %1363 = vmatprep.subr.mxu0 0.0
      %1364 = vmatpush1.msra.mxu0 0.0
      %1365 = vmatprep.mubr.f32.mxu0 0.0
      %1366 = vmatmul.mubr.f32.gmra.mrb[0].mxu0 %v1081
      %v1367 = vpop.f32.mrb[0].mxu0
      %v1368 = vadd.f32 0.0, %v1367
      %v1369 = vpop.f32.mrb[0].mxu0
      %1370 = vdwg.mxu0
      %1371 = vmatprep.subr.mxu0 0.0
      %1372 = vmatpush1.msra.mxu0 %v1269
      %1373 = vmatprep.subr.mxu0 0.0
      %1374 = vmatpush1.msra.mxu0 %v1270
      %1375 = vmatprep.subr.mxu0 0.0
      %1376 = vmatpush1.msra.mxu0 %v1271
      %1377 = vmatprep.subr.mxu0 0.0
      %1378 = vmatpush1.msra.mxu0 %v1272
      %1379 = vmatprep.subr.mxu0 0.0
      %1380 = vmatpush1.msra.mxu0 %v1273
      %1381 = vmatprep.subr.mxu0 0.0
      %1382 = vmatpush1.msra.mxu0 %v1274
      %1383 = vmatprep.subr.mxu0 0.0
      %1384 = vmatpush1.msra.mxu0 %v1275
      %1385 = vmatprep.subr.mxu0 0.0
      %1386 = vmatpush1.msra.mxu0 %v1276
      %1387 = vmatprep.subr.mxu0 0.0
      %1388 = vmatpush1.msra.mxu0 %v1277
      %1389 = vmatprep.subr.mxu0 0.0
      %1390 = vmatpush1.msra.mxu0 %v1278
      %1391 = vmatprep.subr.mxu0 0.0
      %1392 = vmatpush1.msra.mxu0 %v1279
      %1393 = vmatprep.subr.mxu0 0.0
      %1394 = vmatpush1.msra.mxu0 %v1280
      %1395 = vmatprep.subr.mxu0 0.0
      %1396 = vmatpush1.msra.mxu0 %v1281
      %1397 = vmatprep.subr.mxu0 0.0
      %1398 = vmatpush1.msra.mxu0 %v1282
      %1399 = vmatprep.subr.mxu0 0.0
      %1400 = vmatpush1.msra.mxu0 %v1283
      %1401 = vmatprep.subr.mxu0 0.0
      %1402 = vmatpush1.msra.mxu0 %v1284
      %1403 = vmatprep.subr.mxu0 0.0
      %1404 = vmatpush1.msra.mxu0 0.0
      %1405 = vmatprep.subr.mxu0 0.0
      %1406 = vmatpush1.msra.mxu0 0.0
      %1407 = vmatprep.subr.mxu0 0.0
      %1408 = vmatpush1.msra.mxu0 0.0
      %1409 = vmatprep.subr.mxu0 0.0
      %1410 = vmatpush1.msra.mxu0 0.0
      %1411 = vmatprep.subr.mxu0 0.0
      %1412 = vmatpush1.msra.mxu0 0.0
      %1413 = vmatprep.subr.mxu0 0.0
      %1414 = vmatpush1.msra.mxu0 0.0
      %1415 = vmatprep.subr.mxu0 0.0
      %1416 = vmatpush1.msra.mxu0 0.0
      %1417 = vmatprep.subr.mxu0 0.0
      %1418 = vmatpush1.msra.mxu0 0.0
      %1419 = vmatprep.subr.mxu0 0.0
      %1420 = vmatpush1.msra.mxu0 0.0
      %1421 = vmatprep.subr.mxu0 0.0
      %1422 = vmatpush1.msra.mxu0 0.0
      %1423 = vmatprep.subr.mxu0 0.0
      %1424 = vmatpush1.msra.mxu0 0.0
      %1425 = vmatprep.subr.mxu0 0.0
      %1426 = vmatpush1.msra.mxu0 0.0
      %1427 = vmatprep.subr.mxu0 0.0
      %1428 = vmatpush1.msra.mxu0 0.0
      %1429 = vmatprep.subr.mxu0 0.0
      %1430 = vmatpush1.msra.mxu0 0.0
      %1431 = vmatprep.subr.mxu0 0.0
      %1432 = vmatpush1.msra.mxu0 0.0
      %1433 = vmatprep.subr.mxu0 0.0
      %1434 = vmatpush1.msra.mxu0 0.0
      %1435 = vmatprep.mubr.f32.mxu0 0.0
      %1436 = vmatmul.mubr.f32.gmra.mrb[0].mxu0 %v1268
      %v1437 = vpop.f32.mrb[0].mxu0
      %v1438 = vadd.f32 %v1368, %v1437
      %v1439 = vpop.f32.mrb[0].mxu0
      %1440 = vdwg.mxu0
      %v1441 = vld [vmem:[%s18] sm:$0x1]
      %v1443 = vlaneseq
      %v1444 = vshrl.u32 %v1443, 7
      %v1445 = vsub.s32 0, %v1444
      %v1446 = vrot.slane %v1441, %v1445
      %v1448 = vadd.f32 %v1438, %v1446
      %v1449 = vand.u32 2147483647, %v1448
      %vm1450 = vcmp.le.f32.partialorder %v1449, 0.7853982
      %vm1451 = vcmp.lt.s32.totalorder %v1448, 0
      %v1452 = vand.u32 %v1448, 2139095040
      %v1453 = vshrl.u32 %v1452, 23
      %v1454 = vsub.s32 %v1453, 127
      %v1455 = vand.u32 2147483647, %v1448
      %v1456 = vand.u32 %v1455, 8388607
      %v1457 = vor.u32 %v1456, 8388608
      %v1458 = vsub.s32 0, %v1457
      %v1459 = vadd.s32 %v1454, 1
      %vm1460 = vcmp.gt.s32.totalorder %v1459, 0
      %v1461 = vsel %vm1460, %v1459, 0
      %v1462 = vshrl.u32 %v1461, 5
      %v1463 = vand.u32 %v1461, 31
      %v1464 = vsub.s32 32, %v1463
      %v1465 = vshrl.u32 683565275, %v1464
      %v1466 = vshll.u32 683565275, %v1463
      %v1467 = vshrl.u32 2475754826, %v1464
      %v1468 = vor.u32 %v1466, %v1467
      %v1469 = vshll.u32 2475754826, %v1463
      %v1470 = vshrl.u32 2131351028, %v1464
      %v1471 = vor.u32 %v1469, %v1470
      %v1472 = vshll.u32 2131351028, %v1463
      %v1473 = vshrl.u32 2102212464, %v1464
      %v1474 = vor.u32 %v1472, %v1473
      %v1475 = vshll.u32 2102212464, %v1463
      %v1476 = vshrl.u32 920167782, %v1464
      %v1477 = vor.u32 %v1475, %v1476
      %v1478 = vshll.u32 920167782, %v1463
      %v1479 = vshrl.u32 1326507024, %v1464
      %v1480 = vor.u32 %v1478, %v1479
      %vm1481 = vcmp.lt.s32.totalorder %v1462, 1
      %vm1482 = vcmp.lt.s32.totalorder %v1462, 2
      %vm1483 = vcmp.lt.s32.totalorder %v1462, 3
      %vm1484 = vcmp.lt.s32.totalorder %v1462, 4
      %v1485 = vsel %vm1481, %v1465, %v1468
      %v1486 = vsel %vm1484, %v1474, 2102212464
      %v1487 = vsel %vm1483, %v1471, %v1486
      %v1488 = vsel %vm1482, %v1485, %v1487
      %v1489 = vsel %vm1481, %v1468, %v1471
      %v1490 = vsel %vm1484, %v1477, 920167782
      %v1491 = vsel %vm1483, %v1474, %v1490
      %v1492 = vsel %vm1482, %v1489, %v1491
      %v1493 = vsel %vm1481, %v1471, %v1474
      %v1494 = vsel %vm1484, %v1480, 1326507024
      %v1495 = vsel %vm1483, %v1477, %v1494
      %v1496 = vsel %vm1482, %v1493, %v1495
      %v1497 = vshll.u32 %v1457, 8
      %v1498 = vmul.u32.u64.compose %v1497, %v1496
      %v1499 = vextract.low.u32 %v1498
      %v1500 = vextract.high.u32 %v1498
      %v1501 = vmul.u32.u64.compose %v1497, %v1492
      %v1502 = vextract.low.u32 %v1501
      %v1503 = vextract.high.u32 %v1501
      %v1504 = vmul.u32 %v1497, %v1488
      %v1505 = vadd.s32 %v1500, %v1502
      %vm1506 = vc.u32 %v1500, %v1502
      %v1507 = vadd.s32 %v1503, 1
      %v1508 = vsel %vm1506, %v1507, %v1503
      %v1509 = vadd.s32 %v1504, %v1508
      %v1510 = vadd.s32 %v1509, 536870912
      %v1511 = vshrl.u32 %v1510, 30
      %v1512 = vshll.u32 %v1511, 30
      %v1513 = vsub.s32 %v1509, %v1512
      %vm1514 = vcmp.lt.s32.totalorder %v1513, 0
      %v1515 = vsub.s32 0, %v1513
      %v1516 = vsel %vm1514, %v1515, %v1513
      %v1517 = vclz %v1516
      %v1518 = vsub.s32 %v1517, 2
      %vm1519 = vcmp.gt.s32.totalorder 0, %v1518
      %v1520 = vsel %vm1519, 0, %v1518
      %v1521 = vsub.s32 32, %v1520
      %v1522 = vshll.u32 %v1513, %v1520
      %v1523 = vshrl.u32 %v1505, %v1521
      %v1524 = vor.u32 %v1522, %v1523
      %v1525 = vsub.s32 4294967266, %v1520
      %v1526 = vadd.s32 %v1525, 127
      %v1527 = vshll.u32 %v1526, 23
      %v1528 = vor.u32 4788187, %v1527
      %v1529 = vand.u32 2147483647, %v1528
      %v1531 = vcvt.s32.f32 %v1524
      %v1532 = vmul.f32 %v1531, %v1529
      %v1533 = vxor.u32 %v1532, 2147483648
      %v1534 = vsel %vm1451, %v1533, %v1532
      %v1535 = vsub.s32 4, %v1511
      %v1536 = vsel %vm1451, %v1535, %v1511
      %v1537 = vsel %vm1450, %v1448, %v1534
      %v1538 = vsel %vm1450, 0, %v1536
      %v1539 = vcosq.f32.pop %v1537
      %v1540 = vsinq.f32.pop %v1537
      %vm1541 = vweird.f32 %v1448
      %v1542 = vand.u32 %v1538, 3
      %vm1543 = vcmp.lt.s32.totalorder %v1542, 2
      %vm1544 = vcmp.eq.s32.totalorder %v1542, 0
      %v1545 = vxor.u32 %v1540, 2147483648
      %v1546 = vsel %vm1544, %v1539, %v1545
      %vm1547 = vcmp.eq.s32.totalorder %v1542, 2
      %v1548 = vxor.u32 %v1539, 2147483648
      %v1549 = vsel %vm1547, %v1548, %v1540
      %v1550 = vsel %vm1543, %v1546, %v1549
      %v1551 = vsel %vm1541, nan, %v1550
      %v1552 = vmul.f32 %v1267, %v1551
      %1553 = vst [vmem:[%s699] sm:$0xff] %v1552
      %v1554 = vand.u32 2147483647, %v1448
      %vm1555 = vcmp.le.f32.partialorder %v1554, 0.7853982
      %vm1556 = vcmp.lt.s32.totalorder %v1448, 0
      %v1557 = vand.u32 %v1448, 2139095040
      %v1558 = vshrl.u32 %v1557, 23
      %v1559 = vsub.s32 %v1558, 127
      %v1560 = vand.u32 2147483647, %v1448
      %v1561 = vand.u32 %v1560, 8388607
      %v1562 = vor.u32 %v1561, 8388608
      %v1563 = vsub.s32 0, %v1562
      %v1564 = vadd.s32 %v1559, 1
      %vm1565 = vcmp.gt.s32.totalorder %v1564, 0
      %v1566 = vsel %vm1565, %v1564, 0
      %v1567 = vshrl.u32 %v1566, 5
      %v1568 = vand.u32 %v1566, 31
      %v1569 = vsub.s32 32, %v1568
      %v1570 = vshrl.u32 683565275, %v1569
      %v1571 = vshll.u32 683565275, %v1568
      %v1572 = vshrl.u32 2475754826, %v1569
      %v1573 = vor.u32 %v1571, %v1572
      %v1574 = vshll.u32 2475754826, %v1568
      %v1575 = vshrl.u32 2131351028, %v1569
      %v1576 = vor.u32 %v1574, %v1575
      %v1577 = vshll.u32 2131351028, %v1568
      %v1578 = vshrl.u32 2102212464, %v1569
      %v1579 = vor.u32 %v1577, %v1578
      %v1580 = vshll.u32 2102212464, %v1568
      %v1581 = vshrl.u32 920167782, %v1569
      %v1582 = vor.u32 %v1580, %v1581
      %v1583 = vshll.u32 920167782, %v1568
      %v1584 = vshrl.u32 1326507024, %v1569
      %v1585 = vor.u32 %v1583, %v1584
      %vm1586 = vcmp.lt.s32.totalorder %v1567, 1
      %vm1587 = vcmp.lt.s32.totalorder %v1567, 2
      %vm1588 = vcmp.lt.s32.totalorder %v1567, 3
      %vm1589 = vcmp.lt.s32.totalorder %v1567, 4
      %v1590 = vsel %vm1586, %v1570, %v1573
      %v1591 = vsel %vm1589, %v1579, 2102212464
      %v1592 = vsel %vm1588, %v1576, %v1591
      %v1593 = vsel %vm1587, %v1590, %v1592
      %v1594 = vsel %vm1586, %v1573, %v1576
      %v1595 = vsel %vm1589, %v1582, 920167782
      %v1596 = vsel %vm1588, %v1579, %v1595
      %v1597 = vsel %vm1587, %v1594, %v1596
      %v1598 = vsel %vm1586, %v1576, %v1579
      %v1599 = vsel %vm1589, %v1585, 1326507024
      %v1600 = vsel %vm1588, %v1582, %v1599
      %v1601 = vsel %vm1587, %v1598, %v1600
      %v1602 = vshll.u32 %v1562, 8
      %v1603 = vmul.u32.u64.compose %v1602, %v1601
      %v1604 = vextract.low.u32 %v1603
      %v1605 = vextract.high.u32 %v1603
      %v1606 = vmul.u32.u64.compose %v1602, %v1597
      %v1607 = vextract.low.u32 %v1606
      %v1608 = vextract.high.u32 %v1606
      %v1609 = vmul.u32 %v1602, %v1593
      %v1610 = vadd.s32 %v1605, %v1607
      %vm1611 = vc.u32 %v1605, %v1607
      %v1612 = vadd.s32 %v1608, 1
      %v1613 = vsel %vm1611, %v1612, %v1608
      %v1614 = vadd.s32 %v1609, %v1613
      %v1615 = vadd.s32 %v1614, 536870912
      %v1616 = vshrl.u32 %v1615, 30
      %v1617 = vshll.u32 %v1616, 30
      %v1618 = vsub.s32 %v1614, %v1617
      %vm1619 = vcmp.lt.s32.totalorder %v1618, 0
      %v1620 = vsub.s32 0, %v1618
      %v1621 = vsel %vm1619, %v1620, %v1618
      %v1622 = vclz %v1621
      %v1623 = vsub.s32 %v1622, 2
      %vm1624 = vcmp.gt.s32.totalorder 0, %v1623
      %v1625 = vsel %vm1624, 0, %v1623
      %v1626 = vsub.s32 32, %v1625
      %v1627 = vshll.u32 %v1618, %v1625
      %v1628 = vshrl.u32 %v1610, %v1626
      %v1629 = vor.u32 %v1627, %v1628
      %v1630 = vsub.s32 4294967266, %v1625
      %v1631 = vadd.s32 %v1630, 127
      %v1632 = vshll.u32 %v1631, 23
      %v1633 = vor.u32 4788187, %v1632
      %v1634 = vand.u32 2147483647, %v1633
      %v1636 = vcvt.s32.f32 %v1629
      %v1637 = vmul.f32 %v1636, %v1634
      %v1638 = vxor.u32 %v1637, 2147483648
      %v1639 = vsel %vm1556, %v1638, %v1637
      %v1640 = vsub.s32 4, %v1616
      %v1641 = vsel %vm1556, %v1640, %v1616
      %v1642 = vsel %vm1555, %v1448, %v1639
      %v1643 = vsel %vm1555, 0, %v1641
      %v1644 = vcosq.f32.pop %v1642
      %v1645 = vsinq.f32.pop %v1642
      %vm1646 = vweird.f32 %v1448
      %v1647 = vadd.s32 %v1643, 3
      %v1648 = vand.u32 %v1647, 3
      %vm1649 = vcmp.lt.s32.totalorder %v1648, 2
      %vm1650 = vcmp.eq.s32.totalorder %v1648, 0
      %v1651 = vxor.u32 %v1645, 2147483648
      %v1652 = vsel %vm1650, %v1644, %v1651
      %vm1653 = vcmp.eq.s32.totalorder %v1648, 2
      %v1654 = vxor.u32 %v1644, 2147483648
      %v1655 = vsel %vm1653, %v1654, %v1645
      %v1656 = vsel %vm1649, %v1652, %v1655
      %v1657 = vsel %vm1646, nan, %v1656
      %v1658 = vmul.f32 %v1267, %v1657
      %1659 = vst [vmem:[%s703] sm:$0xff] %v1658
      %p1660 = scmp.lt.s32.totalorder %s32, 1
      %s1661 = scalar_select %p1660, %s32, 1
      %s1662 = smul.addr %s1661, 8
      %s1663 = scalar_lea.vmem %s19, %s1662
      %p1664 = scmp.lt.s32.totalorder %s32, 1
      %s1665 = scalar_select %p1664, %s32, 1
      %s1666 = smul.addr %s1665, 8
      %s1667 = scalar_lea.vmem %s20, %s1666
      // Predicated region
      $region97: #{freblock_adjust.1} parent=95 // pred_check
        %p1668 = pneg %p474
      $region98: #{freblock_adjust.1} parent=95 // pred_check_branch
        %1670 = sbr.rel (%p1668) target = $region100
      $region99: #{freblock_adjust.1} parent=95 // pred_region
        _
      $region100: #{freblock_adjust.1} parent=95 // pred_fallthru
        _
      // Predicated region
      $region101: #{freblock_adjust.1} parent=95 // pred_check
        %p1671 = pneg %p500
      $region102: #{freblock_adjust.1} parent=95 // pred_check_branch
        %1673 = sbr.rel (%p1671) target = $region104
      $region103: #{freblock_adjust.1} parent=95 // pred_region
        _
      $region104: #{freblock_adjust.1} parent=95 // pred_fallthru
        _
    $region96: #{freblock_adjust.1} parent=5 // pred_fallthru
      _
    %p1674 = scmp.le.s32.totalorder 2, %s27
    // Predicated region
    $region105: #{freblock_adjust.1} parent=5 // pred_check
      %p1675 = pneg %p1674
    $region106: #{freblock_adjust.1} parent=5 // pred_check_branch
      %1677 = sbr.rel (%p1675) target = $region108
    $region107: #{freblock_adjust.1} parent=5 // pred_region
      %s1678 = ssub.s32 %s27, 2
      // Predicated region
      $region109: #{freblock_adjust.1} parent=107 // pred_check
        %p1679 = pneg %p480
      $region110: #{freblock_adjust.1} parent=107 // pred_check_branch
        %1681 = sbr.rel (%p1679) target = $region112
      $region111: #{freblock_adjust.1} parent=107 // pred_region
        %p1682 = scmp.lt.s32.totalorder %s33, 1
        %s1683 = scalar_select %p1682, %s33, 1
        %s1684 = smul.addr %s1683, 8
        %s1685 = scalar_lea.vmem %s19, %s1684
      $region112: #{freblock_adjust.1} parent=107 // pred_fallthru
        _
      // Predicated region
      $region113: #{freblock_adjust.1} parent=107 // pred_check
        %p1686 = pneg %p506
      $region114: #{freblock_adjust.1} parent=107 // pred_check_branch
        %1688 = sbr.rel (%p1686) target = $region116
      $region115: #{freblock_adjust.1} parent=107 // pred_region
        %p1689 = scmp.lt.s32.totalorder %s33, 1
        %s1690 = scalar_select %p1689, %s33, 1
        %s1691 = smul.addr %s1690, 8
        %s1692 = scalar_lea.vmem %s20, %s1691
      $region116: #{freblock_adjust.1} parent=107 // pred_fallthru
        _
    $region108: #{freblock_adjust.1} parent=5 // pred_fallthru
      _
  $region6: #{freblock_adjust.1} parent=0 // loop_footer
    %s31 = sadd.s32 1, %s27
  $region7: #{freblock_adjust.1} parent=0 // loop_footer_branch
    %26 = sbr.rel target = $region3
  $region8: #{freblock_adjust.1} parent=0 // loop_exit
    _

</llo_original>
